<compile_context>
chip_gen: v5e
topology: v5e:2x2
jax: 0.10.0
libtpu: 0.0.40
codegen_flags: <defaults>
</compile_context>

<pallas_src>
import functools
import math

import jax
import jax.numpy as jnp
from jax import lax
from jax.experimental import pallas as pl
from jax.experimental.pallas import tpu as pltpu

_MiB = 1024 * 1024


def _qkv_attn_kernel(q_ref, k_ref, v_ref, o_ref, *, t_valid, matmul_dtype):
    """One (head-block, query-tile) step of legacy QKV attention.

    q_ref: (Bb, C, Tq)   k_ref: (Bb, C, Tkv)   v_ref: (Bb, C, Tkv)   o_ref: (Bb, C, Tq)
    """
    ch = q_ref.shape[-2]
    t_kv = k_ref.shape[-1]

    # Fold the full 1/sqrt(ch) scale onto Q only: K is VMEM-resident across all query
    # tiles of a head, so scaling it would redo a C*Tkv vmul + vld pass on every tile.
    q = q_ref[...] * (1.0 / math.sqrt(ch))       # (Bb, C, Tq)
    k = k_ref[...]                               # (Bb, C, Tkv)
    v = v_ref[...]                               # (Bb, C, Tkv)

    if matmul_dtype is not None:                 # opt-in bf16-native MXU path (f32 acc)
        q = q.astype(matmul_dtype)
        k = k.astype(matmul_dtype)
        v = v.astype(matmul_dtype)
        prec = None
    else:
        prec = lax.Precision.HIGHEST             # f32 parity with the PyTorch forward

    # w[b, t, s] = sum_c q[b, c, t] * k[b, c, s]  -> (Bb, Tq, Tkv).  Both operands are
    # contracted over the sublane (C) axis (the MXU's native transposed-LHS form), so
    # no XLU transpose is materialized.
    w = jnp.einsum('bct,bcs->bts', q, k,
                   preferred_element_type=jnp.float32, precision=prec)

    if t_valid < t_kv:                           # static check: padded key columns
        key_idx = lax.broadcasted_iota(jnp.int32, w.shape, 2)
        w = jnp.where(key_idx < t_valid, w, -jnp.inf)

    # Softmax over keys in float32 (matches th.softmax(weight.float())), with the
    # normalization deferred past the PV matmul.
    w = w - jnp.max(w, axis=-1, keepdims=True)
    e = jnp.exp(w)                               # unnormalized probabilities, f32
    denom = jnp.sum(e, axis=-1)                  # (Bb, Tq)

    # a[b, c, t] = sum_s v[b, c, s] * e[b, t, s]  -> (Bb, C, Tq).  Contract the shared
    # key (lane) axis directly; the exponential strip is consumed in place.
    a = jnp.einsum('bcs,bts->bct', v, e.astype(v.dtype),
                   preferred_element_type=jnp.float32, precision=prec)

    # EUP reciprocal + one Newton step (~f32 accurate), broadcast over C: a C*Tq
    # multiply instead of a Tq*Tkv normalization pass.
    r = pl.reciprocal(denom, approx=True)
    r = r * (2.0 - denom * r)
    o_ref[...] = (a * r[:, None, :]).astype(o_ref.dtype)


def _vmem_capacity_bytes():
    """Per-core VMEM capacity; falls back to the smallest (v7x) figure."""
    try:
        return int(pltpu.get_tpu_info().vmem_capacity_bytes)
    except Exception:
        return 64 * _MiB


def _vmem_bytes(b_blk, t_kv, ch, tq, itemsize, kv_bufs=2):
    kv = 2 * kv_bufs * b_blk * ch * t_kv * itemsize   # K and V windows
    qo = 2 * 2 * b_blk * ch * tq * itemsize           # Q tile + output tile (double-buffered)
    soft = 3 * b_blk * tq * t_kv * 4                  # f32 logits / exp strips
    acc = 2 * b_blk * ch * tq * 4                     # f32 PV result + scaled copy
    return kv + qo + soft + acc


def _choose_tiling(B, t_kv, ch, itemsize, budget):
    """Pick (head_block, query_tile) for grid = (B // head_block, t_kv // query_tile)."""
    # Short sequences: one full-length block per step; amortize the ~0.35us per-step
    # overhead by batching several heads into one grid step.
    if t_kv <= 256:
        for b_blk in (16, 8, 4, 2, 1):
            if B % b_blk == 0 and _vmem_bytes(b_blk, t_kv, ch, t_kv, itemsize) <= budget:
                return b_blk, t_kv
        return 1, t_kv
    # Long sequences: one head-block per step, largest query tile that fits the budget.
    for tq in (2048, 1024, 512, 256, 128):
        if t_kv % tq == 0 and _vmem_bytes(1, t_kv, ch, tq, itemsize) <= budget:
            return 1, tq
    # TODO(synk): for very long T (>~4K keys) under v7x's 64 MiB VMEM, add an in-kernel
    # key-block (two-pass / online-softmax) loop over T chunks instead of shrinking Tq.
    return 1, (128 if t_kv % 128 == 0 else t_kv)


def qkv_attention_legacy(qkv, n_heads, *, query_tile=None, head_block=None,
                         matmul_dtype=None):
    """Pallas implementation of QKVAttentionLegacy.forward.

    :param qkv: [N, H*3*C, T] array of Qs, Ks and Vs.
    :param matmul_dtype: optional dtype (e.g. jnp.bfloat16) to run both matmuls on the
        bf16-native MXU with f32 accumulation; default keeps full f32 parity.
    :return: [N, H*C, T] array after attention.
    """
    bs, width, length = qkv.shape
    assert width % (3 * n_heads) == 0
    ch = width // (3 * n_heads)
    B = bs * n_heads
    T = length

    # Pure reshape of a contiguous layout -> no data movement; gives Q/K/V their own
    # BlockSpecs (ref-level slicing) instead of slicing a loaded (3C, T) slab.
    x = qkv.reshape(B, 3, ch, T)

    # Awkward lengths: pad to a lane multiple and mask padded keys in the kernel.
    if T % 128 == 0 or T <= 128:
        t_pad = T
    else:
        t_pad = ((T + 127) // 128) * 128
    if t_pad != T:
        x = jnp.pad(x, ((0, 0), (0, 0), (0, 0), (0, t_pad - T)))

    itemsize = jnp.dtype(qkv.dtype).itemsize
    cap = _vmem_capacity_bytes()
    if cap <= 72 * _MiB:                 # v7x-class core: 64 MiB of VMEM
        budget, limit_cap = 36 * _MiB, 48 * _MiB
    else:                                # v5e / v6e: 128 MiB of VMEM
        budget, limit_cap = 96 * _MiB, 100 * _MiB

    b_blk, tq = _choose_tiling(B, t_pad, ch, itemsize, budget)
    if query_tile is not None:
        tq = query_tile
    if head_block is not None:
        b_blk = head_block
    assert B % b_blk == 0
    assert t_pad % tq == 0 and (tq == t_pad or tq % 128 == 0)
    nq = t_pad // tq

    # Triple-buffer the per-head K/V windows on big-VMEM chips so the next head-block's
    # fetch starts one query tile earlier (hides the head-boundary DMA stall).
    kv_bufs = 3 if (cap > 72 * _MiB and
                    _vmem_bytes(b_blk, t_pad, ch, tq, itemsize, kv_bufs=3) <= budget) else 2
    kv_kwargs = {}
    if kv_bufs == 3 and hasattr(pl, "Buffered"):
        try:
            pl.BlockSpec((8, 128), lambda i, j: (0, 0), pipeline_mode=pl.Buffered(3))
            kv_kwargs = dict(pipeline_mode=pl.Buffered(3))
        except TypeError:
            kv_bufs = 2

    working = _vmem_bytes(b_blk, t_pad, ch, tq, itemsize, kv_bufs)
    vmem_limit = int(min(max(int(1.25 * working), 32 * _MiB), limit_cap))

    kernel = functools.partial(_qkv_attn_kernel, t_valid=T, matmul_dtype=matmul_dtype)

    out = pl.pallas_call(
        kernel,
        out_shape=jax.ShapeDtypeStruct((B, ch, t_pad), qkv.dtype),
        grid=(B // b_blk, nq),
        in_specs=[
            # Q: one (Bb, C, Tq) tile per (head-block, query-tile) step.
            pl.BlockSpec((b_blk, None, ch, tq), lambda b, t: (b, 0, 0, t)),
            # K, V: full (Bb, C, T) slabs, resident per head-block (index_map ignores t).
            pl.BlockSpec((b_blk, None, ch, t_pad), lambda b, t: (b, 1, 0, 0), **kv_kwargs),
            pl.BlockSpec((b_blk, None, ch, t_pad), lambda b, t: (b, 2, 0, 0), **kv_kwargs),
        ],
        out_specs=pl.BlockSpec((b_blk, ch, tq), lambda b, t: (b, 0, t)),
        compiler_params=pltpu.CompilerParams(
            # Head axis "parallel", query axis "arbitrary": on v7x the megacore split
            # lands on heads, so each core keeps its own K/V residency (no duplicated
            # K/V DMA); the query-tile loop stays sequential over the resident slab.
            dimension_semantics=("parallel", "arbitrary"),
            vmem_limit_bytes=vmem_limit),
    )(x, x, x)

    out = out.reshape(bs, n_heads * ch, t_pad)
    if t_pad != T:
        out = out[:, :, :T]
    return out


def _reference(qkv, n_heads):
    """Pure-JAX reference mirroring the PyTorch forward exactly."""
    bs, width, length = qkv.shape
    ch = width // (3 * n_heads)
    x = qkv.reshape(bs * n_heads, 3 * ch, length)
    q, k, v = x[:, :ch], x[:, ch:2 * ch], x[:, 2 * ch:]
    scale = 1.0 / math.sqrt(math.sqrt(ch))
    w = jnp.einsum('bct,bcs->bts', q * scale, k * scale,
                   precision=lax.Precision.HIGHEST)
    w = jax.nn.softmax(w.astype(jnp.float32), axis=-1).astype(w.dtype)
    a = jnp.einsum('bts,bcs->bct', w, v, precision=lax.Precision.HIGHEST)
    return a.reshape(bs, -1, length)


if __name__ == "__main__":
    key0, key1, key2 = jax.random.split(jax.random.PRNGKey(0), 3)

    # Case 1: the module's small demo shape (T=16 -> single full-T block, several heads
    # batched into one grid step).
    n_heads, N, C, T = 2, 2, 8, 16                       # qkv width = H*3*C = 48
    qkv = jax.random.normal(key0, (N, n_heads * 3 * C, T), dtype=jnp.float32)
    out = jax.block_until_ready(qkv_attention_legacy(qkv, n_heads))
    ref = _reference(qkv, n_heads)
    assert out.shape == (N, n_heads * C, T)
    assert jnp.allclose(out, ref, atol=3e-5, rtol=3e-5)

    # Case 2: exercise the query-tiled path (2 query tiles, K/V resident per head-block).
    n_heads2, N2, C2, T2 = 2, 1, 16, 256                 # qkv width = 96
    qkv2 = jax.random.normal(key1, (N2, n_heads2 * 3 * C2, T2), dtype=jnp.float32)
    out2 = jax.block_until_ready(
        qkv_attention_legacy(qkv2, n_heads2, query_tile=128))
    ref2 = _reference(qkv2, n_heads2)
    assert out2.shape == (N2, n_heads2 * C2, T2)
    assert jnp.allclose(out2, ref2, atol=3e-5, rtol=3e-5)

    # Case 3: awkward length (T=160) -> padded to 256 with -inf key masking.
    n_heads3, N3, C3, T3 = 2, 1, 8, 160                  # qkv width = 48
    qkv3 = jax.random.normal(key2, (N3, n_heads3 * 3 * C3, T3), dtype=jnp.float32)
    out3 = jax.block_until_ready(qkv_attention_legacy(qkv3, n_heads3))
    ref3 = _reference(qkv3, n_heads3)
    assert out3.shape == (N3, n_heads3 * C3, T3)
    assert jnp.allclose(out3, ref3, atol=3e-5, rtol=3e-5)

    print("KERNEL_OK")
</pallas_src>

<mosaic_0001>
module attributes {stable_mosaic.version = 11 : i64} {
  func.func @_qkv_attn_kernel(%arg0: i32, %arg1: i32, %arg2: memref<4x1x8x16xf32, #tpu.memory_space<vmem>>, %arg3: memref<4x1x8x16xf32, #tpu.memory_space<vmem>>, %arg4: memref<4x1x8x16xf32, #tpu.memory_space<vmem>>, %arg5: memref<4x8x16xf32, #tpu.memory_space<vmem>>) attributes {dimension_semantics = [#tpu.dimension_semantics<parallel>, #tpu.dimension_semantics<arbitrary>], iteration_bounds = array<i64: 1, 1>, scalar_prefetch = 0 : i64, scratch_operands = 0 : i64, tpu.core_type = #tpu.core_type<tc>, window_params = [{transform_indices = @transform_0, window_bounds = array<i64: 4, 1, 8, 16>}, {transform_indices = @transform_1, window_bounds = array<i64: 4, 1, 8, 16>}, {transform_indices = @transform_2, window_bounds = array<i64: 4, 1, 8, 16>}, {transform_indices = @transform_3, window_bounds = array<i64: 4, 8, 16>}]} {
    %c0 = arith.constant 0 : index
    %c0_0 = arith.constant 0 : index
    %c0_1 = arith.constant 0 : index
    %c0_2 = arith.constant 0 : index
    %0 = vector.load %arg2[%c0, %c0_0, %c0_1, %c0_2] : memref<4x1x8x16xf32, #tpu.memory_space<vmem>>, vector<4x1x8x16xf32>
    %1 = vector.shape_cast %0 : vector<4x1x8x16xf32> to vector<4x8x16xf32>
    %cst = arith.constant 0.353553385 : f32
    %2 = vector.broadcast %cst : f32 to vector<4x8x16xf32>
    %3 = arith.mulf %1, %2 : vector<4x8x16xf32>
    %c0_3 = arith.constant 0 : index
    %c0_4 = arith.constant 0 : index
    %c0_5 = arith.constant 0 : index
    %c0_6 = arith.constant 0 : index
    %4 = vector.load %arg3[%c0_3, %c0_4, %c0_5, %c0_6] : memref<4x1x8x16xf32, #tpu.memory_space<vmem>>, vector<4x1x8x16xf32>
    %5 = vector.shape_cast %4 : vector<4x1x8x16xf32> to vector<4x8x16xf32>
    %c0_7 = arith.constant 0 : index
    %c0_8 = arith.constant 0 : index
    %c0_9 = arith.constant 0 : index
    %c0_10 = arith.constant 0 : index
    %6 = vector.load %arg4[%c0_7, %c0_8, %c0_9, %c0_10] : memref<4x1x8x16xf32, #tpu.memory_space<vmem>>, vector<4x1x8x16xf32>
    %7 = vector.shape_cast %6 : vector<4x1x8x16xf32> to vector<4x8x16xf32>
    "tpu.trace_start"() <{level = 10 : i32, message = "bct,bcs->bts"}> : () -> ()
    %cst_11 = arith.constant dense<0.000000e+00> : vector<4x16x16xf32>
    %8 = tpu.matmul %3, %5, %cst_11 {dimension_numbers = #tpu.dot_dimension_numbers<[1], [1], [2], [2], [0, 0, 0, 2, 1, 2], [0], [0]>, precision = #tpu.contract_precision<fp32>} : vector<4x8x16xf32>, vector<4x8x16xf32>, vector<4x16x16xf32> -> vector<4x16x16xf32>
    "tpu.trace_stop"() : () -> ()
    %cst_12 = arith.constant dense<0xFF800000> : vector<4x16xf32>
    %9 = vector.multi_reduction <maximumf>, %8, %cst_12 [2] : vector<4x16x16xf32> to vector<4x16xf32>
    %10 = vector.shape_cast %9 : vector<4x16xf32> to vector<4x16x1xf32>
    %11 = vector.broadcast %10 : vector<4x16x1xf32> to vector<4x16x16xf32>
    %12 = arith.subf %8, %11 : vector<4x16x16xf32>
    %13 = math.exp %12 : vector<4x16x16xf32>
    %cst_13 = arith.constant dense<0.000000e+00> : vector<4x16xf32>
    %14 = vector.multi_reduction <add>, %13, %cst_13 [2] : vector<4x16x16xf32> to vector<4x16xf32>
    "tpu.trace_start"() <{level = 10 : i32, message = "bcs,bts->bct"}> : () -> ()
    %cst_14 = arith.constant dense<0.000000e+00> : vector<4x8x16xf32>
    %15 = tpu.matmul %7, %13, %cst_14 {dimension_numbers = #tpu.dot_dimension_numbers<[2], [2], [1], [1], [0, 0, 0, 1, 1, 1], [0], [0]>, precision = #tpu.contract_precision<fp32>} : vector<4x8x16xf32>, vector<4x16x16xf32>, vector<4x8x16xf32> -> vector<4x8x16xf32>
    "tpu.trace_stop"() : () -> ()
    %16 = tpu.reciprocal %14 {approx = true} : vector<4x16xf32> -> vector<4x16xf32>
    %17 = arith.mulf %14, %16 : vector<4x16xf32>
    %cst_15 = arith.constant 2.000000e+00 : f32
    %18 = vector.broadcast %cst_15 : f32 to vector<4x16xf32>
    %19 = arith.subf %18, %17 : vector<4x16xf32>
    %20 = arith.mulf %16, %19 : vector<4x16xf32>
    %21 = vector.shape_cast %20 : vector<4x16xf32> to vector<4x1x16xf32>
    %22 = vector.broadcast %21 : vector<4x1x16xf32> to vector<4x8x16xf32>
    %23 = arith.mulf %15, %22 : vector<4x8x16xf32>
    %c0_16 = arith.constant 0 : index
    %c0_17 = arith.constant 0 : index
    %c0_18 = arith.constant 0 : index
    %24 = vector.load %arg5[%c0_16, %c0_17, %c0_18] : memref<4x8x16xf32, #tpu.memory_space<vmem>>, vector<4x8x16xf32>
    tpu.vector_store %arg5[%c0_16, %c0_17, %c0_18], %23 {strides = array<i32>} : memref<4x8x16xf32, #tpu.memory_space<vmem>>, vector<4x8x16xf32>,
    return
  }
  func.func @transform_0(%arg0: i32, %arg1: i32) -> (i32, i32, i32, i32) {
    %c0_i32 = arith.constant 0 : i32
    %c0_i32_0 = arith.constant 0 : i32
    %c0_i32_1 = arith.constant 0 : i32
    return %arg0, %c0_i32, %c0_i32_0, %arg1 : i32, i32, i32, i32
  }
  func.func @transform_1(%arg0: i32, %arg1: i32) -> (i32, i32, i32, i32) {
    %c1_i32 = arith.constant 1 : i32
    %c0_i32 = arith.constant 0 : i32
    %c0_i32_0 = arith.constant 0 : i32
    %c0_i32_1 = arith.constant 0 : i32
    return %arg0, %c1_i32, %c0_i32, %c0_i32_0 : i32, i32, i32, i32
  }
  func.func @transform_2(%arg0: i32, %arg1: i32) -> (i32, i32, i32, i32) {
    %c2_i32 = arith.constant 2 : i32
    %c0_i32 = arith.constant 0 : i32
    %c0_i32_0 = arith.constant 0 : i32
    %c0_i32_1 = arith.constant 0 : i32
    return %arg0, %c2_i32, %c0_i32, %c0_i32_0 : i32, i32, i32, i32
  }
  func.func @transform_3(%arg0: i32, %arg1: i32) -> (i32, i32, i32) {
    %c0_i32 = arith.constant 0 : i32
    %c0_i32_0 = arith.constant 0 : i32
    return %arg0, %c0_i32, %arg1 : i32, i32, i32
  }
}

</mosaic_0001>

<llo_original>
// kernel: tpu_custom_call.1
$region0: #{tpu_custom_call.1}
  #allocation0 [shape = 'u32[]', space=smem, size = 0x4, offset = 0x4, fixed_abs, tag = 'smem constant byte address 0x4 - core index']
  #allocation1 [shape = 'u32[72,128]{1,0:T(1,128)}', space=vmem, size = 0x9000, scoped, tag = 'internal scratch']
  %s0 = inlined_call_operand.hbm [shape: f32[4,3,8,16], index: 0, kind: input, shape index: {}]
  %s1 = inlined_call_operand.hbm [shape: f32[4,3,8,16], index: 1, kind: input, shape index: {}]
  %s2 = inlined_call_operand.hbm [shape: f32[4,3,8,16], index: 2, kind: input, shape index: {}]
  %s3 = inlined_call_operand.hbm [shape: f32[4,8,16], index: 3, kind: output, shape index: {}]
  %s4 = sld [smem:[#allocation0]]
  $region34: #{tpu_custom_call.1} parent=0
    _
  %s6 = ssub.s32 1, %s4
  %s7 = scalar_select 0, %s6, %s4
  $region1: #{tpu_custom_call.1} parent=0
    #allocation2 [shape = 'u8[16384]{0}', space=vmem, size = 0x4000, scoped, tag = 'input window, operand 0, single buffered']
    #allocation3 [shape = 's32[1]{0}', space=sflag, size = 0x4, scoped, tag = 'scoped memory for tpu_custom_call.1']
    #allocation4 [shape = 's32[1]{0}', space=sflag, size = 0x4, scoped, tag = 'scoped memory for tpu_custom_call.1']
    #allocation5 [shape = 'u8[16384]{0}', space=vmem, size = 0x4000, scoped, tag = 'input window, operand 1, single buffered']
    #allocation6 [shape = 's32[1]{0}', space=sflag, size = 0x4, scoped, tag = 'scoped memory for tpu_custom_call.1']
    #allocation7 [shape = 'u8[16384]{0}', space=vmem, size = 0x4000, scoped, tag = 'input window, operand 2, single buffered']
    #allocation8 [shape = 'u8[16384]{0}', space=vmem, size = 0x4000, scoped, tag = 'output window, operand 0, single buffered']
    %8 = vsyncpa [#allocation3], 0
    %9 = vsyncpa [#allocation6], 0
    %10 = vsyncpa [#allocation4], 0
    // Predicated region
    $region2: #{tpu_custom_call.1} parent=1 // pred_check
      _
    $region3: #{tpu_custom_call.1} parent=1 // pred_check_branch
      %12 = sbr.rel (0) target = $region5
    $region4: #{tpu_custom_call.1} parent=1 // pred_region
      %14 = vsyncadd [#allocation3], 0
      %s15 = sshll.u32 %s0, 4
      %s16 = int_to_ptr.hbm [resolvable:$true] %s15
      %s17 = sshll.u32 [#allocation2], 4
      %s18 = int_to_ptr.vmem [resolvable:$true] %s17
      %23 = dma.hbm_to_vmem [thread:$0]  %s16, 512, %s18, [#allocation3], 384, 128, 8
    $region5: #{tpu_custom_call.1} parent=1 // pred_fallthru
      _
    // Predicated region
    $region6: #{tpu_custom_call.1} parent=1 // pred_check
      _
    $region7: #{tpu_custom_call.1} parent=1 // pred_check_branch
      %25 = sbr.rel (0) target = $region9
    $region8: #{tpu_custom_call.1} parent=1 // pred_region
      %27 = vsyncadd [#allocation6], 0
      %s28 = scalar_lea.hbm %s1, 8
      %s29 = sshll.u32 %s28, 4
      %s30 = int_to_ptr.hbm [resolvable:$true] %s29
      %s31 = sshll.u32 [#allocation5], 4
      %s32 = int_to_ptr.vmem [resolvable:$true] %s31
      %37 = dma.hbm_to_vmem [thread:$0]  %s30, 512, %s32, [#allocation6], 384, 128, 8
    $region9: #{tpu_custom_call.1} parent=1 // pred_fallthru
      _
    // Predicated region
    $region10: #{tpu_custom_call.1} parent=1 // pred_check
      _
    $region11: #{tpu_custom_call.1} parent=1 // pred_check_branch
      %39 = sbr.rel (0) target = $region13
    $region12: #{tpu_custom_call.1} parent=1 // pred_region
      %41 = vsyncadd [#allocation6], 0
      %s42 = scalar_lea.hbm %s2, 16
      %s43 = sshll.u32 %s42, 4
      %s44 = int_to_ptr.hbm [resolvable:$true] %s43
      %s45 = sshll.u32 [#allocation7], 4
      %s46 = int_to_ptr.vmem [resolvable:$true] %s45
      %51 = dma.hbm_to_vmem [thread:$0]  %s44, 512, %s46, [#allocation6], 384, 128, 8
    $region13: #{tpu_custom_call.1} parent=1 // pred_fallthru
      _
    // Predicated region
    $region14: #{tpu_custom_call.1} parent=1 // pred_check
      _
    $region15: #{tpu_custom_call.1} parent=1 // pred_check_branch
      %53 = sbr.rel (0) target = $region17
    $region16: #{tpu_custom_call.1} parent=1 // pred_region
      %55 = dma.done [#allocation3], 512
    $region17: #{tpu_custom_call.1} parent=1 // pred_fallthru
      _
    // Predicated region
    $region18: #{tpu_custom_call.1} parent=1 // pred_check
      _
    $region19: #{tpu_custom_call.1} parent=1 // pred_check_branch
      %57 = sbr.rel (0) target = $region21
    $region20: #{tpu_custom_call.1} parent=1 // pred_region
      %59 = dma.done [#allocation6], 512
    $region21: #{tpu_custom_call.1} parent=1 // pred_fallthru
      _
    // Predicated region
    $region22: #{tpu_custom_call.1} parent=1 // pred_check
      _
    $region23: #{tpu_custom_call.1} parent=1 // pred_check_branch
      %61 = sbr.rel (0) target = $region25
    $region24: #{tpu_custom_call.1} parent=1 // pred_region
      %63 = dma.done [#allocation6], 512
    $region25: #{tpu_custom_call.1} parent=1 // pred_fallthru
      _
    %v64 = vld [vmem:[#allocation2] sm:$0xff]
    %v65 = vld [vmem:[#allocation2 + $0x8] sm:$0xff]
    %v66 = vld [vmem:[#allocation2 + $0x10] sm:$0xff]
    %v67 = vld [vmem:[#allocation2 + $0x18] sm:$0xff]
    %v68 = vmul.f32 %v64, 0.35355338
    %v69 = vmul.f32 %v65, 0.35355338
    %v70 = vmul.f32 %v66, 0.35355338
    %v71 = vmul.f32 %v67, 0.35355338
    %v72 = vld [vmem:[#allocation5] sm:$0xff]
    %v73 = vld [vmem:[#allocation5 + $0x8] sm:$0xff]
    %v74 = vld [vmem:[#allocation5 + $0x10] sm:$0xff]
    %v75 = vld [vmem:[#allocation5 + $0x18] sm:$0xff]
    %v76 = vld [vmem:[#allocation7] sm:$0xff]
    %v77 = vld [vmem:[#allocation7 + $0x8] sm:$0xff]
    %v78 = vld [vmem:[#allocation7 + $0x10] sm:$0xff]
    %v79 = vld [vmem:[#allocation7 + $0x18] sm:$0xff]
    %80 = vxpose.xlu0.b32.start [1/16] %v68, 128
    %81 = vxpose.xlu0.b32.cont [2/16] 0.0, 128
    %82 = vxpose.xlu0.b32.cont [3/16] 0.0, 128
    %83 = vxpose.xlu0.b32.cont [4/16] 0.0, 128
    %84 = vxpose.xlu0.b32.cont [5/16] 0.0, 128
    %85 = vxpose.xlu0.b32.cont [6/16] 0.0, 128
    %86 = vxpose.xlu0.b32.cont [7/16] 0.0, 128
    %87 = vxpose.xlu0.b32.cont [8/16] 0.0, 128
    %88 = vxpose.xlu0.b32.cont [9/16] 0.0, 128
    %89 = vxpose.xlu0.b32.cont [10/16] 0.0, 128
    %90 = vxpose.xlu0.b32.cont [11/16] 0.0, 128
    %91 = vxpose.xlu0.b32.cont [12/16] 0.0, 128
    %92 = vxpose.xlu0.b32.cont [13/16] 0.0, 128
    %93 = vxpose.xlu0.b32.cont [14/16] 0.0, 128
    %94 = vxpose.xlu0.b32.cont [15/16] 0.0, 128
    %95 = vxpose.xlu0.b32.end [16/16] 0.0, 128
    %v96 = vpop.trf.xlu0
    %v97 = vpop.trf.xlu0
    %v98 = vpop.trf.xlu0
    %v99 = vpop.trf.xlu0
    %v100 = vpop.trf.xlu0
    %v101 = vpop.trf.xlu0
    %v102 = vpop.trf.xlu0
    %v103 = vpop.trf.xlu0
    %v104 = vpop.trf.xlu0
    %v105 = vpop.trf.xlu0
    %v106 = vpop.trf.xlu0
    %v107 = vpop.trf.xlu0
    %v108 = vpop.trf.xlu0
    %v109 = vpop.trf.xlu0
    %v110 = vpop.trf.xlu0
    %v111 = vpop.trf.xlu0
    %vm112 = vcmask 64512
    %v114 = vsel %vm112, %v96, 0
    %v117 = vsel %vm112, %v97, 0
    %119 = vmatpush.msra.mxu0 0.0
    %120 = vmatpush.msra.mxu0 0.0
    %121 = vmatpush.msra.mxu0 0.0
    %122 = vmatpush.msra.mxu0 0.0
    %123 = vmatpush.msra.mxu0 0.0
    %124 = vmatpush.msra.mxu0 0.0
    %125 = vmatpush.msra.mxu0 0.0
    %126 = vmatpush.msra.mxu0 0.0
    %127 = vmatpush.msra.mxu0 0.0
    %128 = vmatpush.msra.mxu0 0.0
    %129 = vmatpush.msra.mxu0 0.0
    %130 = vmatpush.msra.mxu0 0.0
    %131 = vmatpush.msra.mxu0 0.0
    %132 = vmatpush.msra.mxu0 0.0
    %133 = vmatpush.msra.mxu0 0.0
    %v134 = vand.u32 %v72, 4294901760
    %135 = vmatpush.msra.mxu0 %v134
    %v136 = vand.u32 %v114, 4294901760
    %v137 = vsub.f32 %v114, %v136
    %v138 = vand.u32 %v137, 4294901760
    %v139 = vsub.f32 %v137, %v138
    %v140 = vand.u32 %v139, 4294901760
    %141 = vmatmul.f32.gmra.mxu0 %v140
    %v142 = vpop.f32.mrf.mxu0
    %v143 = vadd.f32 0.0, %v142
    %v144 = vand.u32 %v117, 4294901760
    %v145 = vsub.f32 %v117, %v144
    %v146 = vand.u32 %v145, 4294901760
    %v147 = vsub.f32 %v145, %v146
    %v148 = vand.u32 %v147, 4294901760
    %149 = vmatmul.f32.gmra.mxu0 %v148
    %v150 = vpop.f32.mrf.mxu0
    %v151 = vadd.f32 0.0, %v150
    %152 = vdwg.mxu0
    %153 = vmatpush.msra.mxu0 0.0
    %154 = vmatpush.msra.mxu0 0.0
    %155 = vmatpush.msra.mxu0 0.0
    %156 = vmatpush.msra.mxu0 0.0
    %157 = vmatpush.msra.mxu0 0.0
    %158 = vmatpush.msra.mxu0 0.0
    %159 = vmatpush.msra.mxu0 0.0
    %160 = vmatpush.msra.mxu0 0.0
    %161 = vmatpush.msra.mxu0 0.0
    %162 = vmatpush.msra.mxu0 0.0
    %163 = vmatpush.msra.mxu0 0.0
    %164 = vmatpush.msra.mxu0 0.0
    %165 = vmatpush.msra.mxu0 0.0
    %166 = vmatpush.msra.mxu0 0.0
    %167 = vmatpush.msra.mxu0 0.0
    %v168 = vand.u32 %v72, 4294901760
    %v169 = vsub.f32 %v72, %v168
    %v170 = vand.u32 %v169, 4294901760
    %v171 = vsub.f32 %v169, %v170
    %v172 = vand.u32 %v171, 4294901760
    %173 = vmatpush.msra.mxu0 %v172
    %v174 = vand.u32 %v114, 4294901760
    %175 = vmatmul.f32.gmra.mxu0 %v174
    %v176 = vpop.f32.mrf.mxu0
    %v177 = vadd.f32 %v143, %v176
    %v178 = vand.u32 %v117, 4294901760
    %179 = vmatmul.f32.gmra.mxu0 %v178
    %v180 = vpop.f32.mrf.mxu0
    %v181 = vadd.f32 %v151, %v180
    %182 = vdwg.mxu0
    %183 = vmatpush.msra.mxu0 0.0
    %184 = vmatpush.msra.mxu0 0.0
    %185 = vmatpush.msra.mxu0 0.0
    %186 = vmatpush.msra.mxu0 0.0
    %187 = vmatpush.msra.mxu0 0.0
    %188 = vmatpush.msra.mxu0 0.0
    %189 = vmatpush.msra.mxu0 0.0
    %190 = vmatpush.msra.mxu0 0.0
    %191 = vmatpush.msra.mxu0 0.0
    %192 = vmatpush.msra.mxu0 0.0
    %193 = vmatpush.msra.mxu0 0.0
    %194 = vmatpush.msra.mxu0 0.0
    %195 = vmatpush.msra.mxu0 0.0
    %196 = vmatpush.msra.mxu0 0.0
    %197 = vmatpush.msra.mxu0 0.0
    %v198 = vand.u32 %v72, 4294901760
    %v199 = vsub.f32 %v72, %v198
    %200 = vmatpush.msra.mxu0 %v199
    %v201 = vand.u32 %v114, 4294901760
    %v202 = vsub.f32 %v114, %v201
    %203 = vmatmul.f32.gmra.mxu0 %v202
    %v204 = vpop.f32.mrf.mxu0
    %v205 = vadd.f32 %v177, %v204
    %v206 = vand.u32 %v117, 4294901760
    %v207 = vsub.f32 %v117, %v206
    %208 = vmatmul.f32.gmra.mxu0 %v207
    %v209 = vpop.f32.mrf.mxu0
    %v210 = vadd.f32 %v181, %v209
    %211 = vdwg.mxu0
    %212 = vmatpush.msra.mxu0 0.0
    %213 = vmatpush.msra.mxu0 0.0
    %214 = vmatpush.msra.mxu0 0.0
    %215 = vmatpush.msra.mxu0 0.0
    %216 = vmatpush.msra.mxu0 0.0
    %217 = vmatpush.msra.mxu0 0.0
    %218 = vmatpush.msra.mxu0 0.0
    %219 = vmatpush.msra.mxu0 0.0
    %220 = vmatpush.msra.mxu0 0.0
    %221 = vmatpush.msra.mxu0 0.0
    %222 = vmatpush.msra.mxu0 0.0
    %223 = vmatpush.msra.mxu0 0.0
    %224 = vmatpush.msra.mxu0 0.0
    %225 = vmatpush.msra.mxu0 0.0
    %226 = vmatpush.msra.mxu0 0.0
    %v227 = vand.u32 %v72, 4294901760
    %228 = vmatpush.msra.mxu0 %v227
    %v229 = vand.u32 %v114, 4294901760
    %v230 = vsub.f32 %v114, %v229
    %v231 = vand.u32 %v230, 4294901760
    %232 = vmatmul.f32.gmra.mxu0 %v231
    %v233 = vpop.f32.mrf.mxu0
    %v234 = vadd.f32 %v205, %v233
    %v235 = vand.u32 %v117, 4294901760
    %v236 = vsub.f32 %v117, %v235
    %v237 = vand.u32 %v236, 4294901760
    %238 = vmatmul.f32.gmra.mxu0 %v237
    %v239 = vpop.f32.mrf.mxu0
    %v240 = vadd.f32 %v210, %v239
    %241 = vdwg.mxu0
    %242 = vmatpush.msra.mxu0 0.0
    %243 = vmatpush.msra.mxu0 0.0
    %244 = vmatpush.msra.mxu0 0.0
    %245 = vmatpush.msra.mxu0 0.0
    %246 = vmatpush.msra.mxu0 0.0
    %247 = vmatpush.msra.mxu0 0.0
    %248 = vmatpush.msra.mxu0 0.0
    %249 = vmatpush.msra.mxu0 0.0
    %250 = vmatpush.msra.mxu0 0.0
    %251 = vmatpush.msra.mxu0 0.0
    %252 = vmatpush.msra.mxu0 0.0
    %253 = vmatpush.msra.mxu0 0.0
    %254 = vmatpush.msra.mxu0 0.0
    %255 = vmatpush.msra.mxu0 0.0
    %256 = vmatpush.msra.mxu0 0.0
    %v257 = vand.u32 %v72, 4294901760
    %v258 = vsub.f32 %v72, %v257
    %v259 = vand.u32 %v258, 4294901760
    %260 = vmatpush.msra.mxu0 %v259
    %v261 = vand.u32 %v114, 4294901760
    %262 = vmatmul.f32.gmra.mxu0 %v261
    %v263 = vpop.f32.mrf.mxu0
    %v264 = vadd.f32 %v234, %v263
    %v265 = vand.u32 %v117, 4294901760
    %266 = vmatmul.f32.gmra.mxu0 %v265
    %v267 = vpop.f32.mrf.mxu0
    %v268 = vadd.f32 %v240, %v267
    %269 = vdwg.mxu0
    %270 = vmatpush.msra.mxu0 0.0
    %271 = vmatpush.msra.mxu0 0.0
    %272 = vmatpush.msra.mxu0 0.0
    %273 = vmatpush.msra.mxu0 0.0
    %274 = vmatpush.msra.mxu0 0.0
    %275 = vmatpush.msra.mxu0 0.0
    %276 = vmatpush.msra.mxu0 0.0
    %277 = vmatpush.msra.mxu0 0.0
    %278 = vmatpush.msra.mxu0 0.0
    %279 = vmatpush.msra.mxu0 0.0
    %280 = vmatpush.msra.mxu0 0.0
    %281 = vmatpush.msra.mxu0 0.0
    %282 = vmatpush.msra.mxu0 0.0
    %283 = vmatpush.msra.mxu0 0.0
    %284 = vmatpush.msra.mxu0 0.0
    %v285 = vand.u32 %v72, 4294901760
    %286 = vmatpush.msra.mxu0 %v285
    %v287 = vand.u32 %v114, 4294901760
    %288 = vmatmul.f32.gmra.mxu0 %v287
    %v289 = vpop.f32.mrf.mxu0
    %v290 = vadd.f32 %v264, %v289
    %v291 = vand.u32 %v117, 4294901760
    %292 = vmatmul.f32.gmra.mxu0 %v291
    %v293 = vpop.f32.mrf.mxu0
    %v294 = vadd.f32 %v268, %v293
    %295 = vdwg.mxu0
    %296 = vxpose.xlu0.b32.start [1/16] %v69, 128
    %297 = vxpose.xlu0.b32.cont [2/16] 0.0, 128
    %298 = vxpose.xlu0.b32.cont [3/16] 0.0, 128
    %299 = vxpose.xlu0.b32.cont [4/16] 0.0, 128
    %300 = vxpose.xlu0.b32.cont [5/16] 0.0, 128
    %301 = vxpose.xlu0.b32.cont [6/16] 0.0, 128
    %302 = vxpose.xlu0.b32.cont [7/16] 0.0, 128
    %303 = vxpose.xlu0.b32.cont [8/16] 0.0, 128
    %304 = vxpose.xlu0.b32.cont [9/16] 0.0, 128
    %305 = vxpose.xlu0.b32.cont [10/16] 0.0, 128
    %306 = vxpose.xlu0.b32.cont [11/16] 0.0, 128
    %307 = vxpose.xlu0.b32.cont [12/16] 0.0, 128
    %308 = vxpose.xlu0.b32.cont [13/16] 0.0, 128
    %309 = vxpose.xlu0.b32.cont [14/16] 0.0, 128
    %310 = vxpose.xlu0.b32.cont [15/16] 0.0, 128
    %311 = vxpose.xlu0.b32.end [16/16] 0.0, 128
    %v312 = vpop.trf.xlu0
    %v313 = vpop.trf.xlu0
    %v314 = vpop.trf.xlu0
    %v315 = vpop.trf.xlu0
    %v316 = vpop.trf.xlu0
    %v317 = vpop.trf.xlu0
    %v318 = vpop.trf.xlu0
    %v319 = vpop.trf.xlu0
    %v320 = vpop.trf.xlu0
    %v321 = vpop.trf.xlu0
    %v322 = vpop.trf.xlu0
    %v323 = vpop.trf.xlu0
    %v324 = vpop.trf.xlu0
    %v325 = vpop.trf.xlu0
    %v326 = vpop.trf.xlu0
    %v327 = vpop.trf.xlu0
    %v329 = vsel %vm112, %v312, 0
    %v332 = vsel %vm112, %v313, 0
    %334 = vmatpush.msra.mxu0 0.0
    %335 = vmatpush.msra.mxu0 0.0
    %336 = vmatpush.msra.mxu0 0.0
    %337 = vmatpush.msra.mxu0 0.0
    %338 = vmatpush.msra.mxu0 0.0
    %339 = vmatpush.msra.mxu0 0.0
    %340 = vmatpush.msra.mxu0 0.0
    %341 = vmatpush.msra.mxu0 0.0
    %342 = vmatpush.msra.mxu0 0.0
    %343 = vmatpush.msra.mxu0 0.0
    %344 = vmatpush.msra.mxu0 0.0
    %345 = vmatpush.msra.mxu0 0.0
    %346 = vmatpush.msra.mxu0 0.0
    %347 = vmatpush.msra.mxu0 0.0
    %348 = vmatpush.msra.mxu0 0.0
    %v349 = vand.u32 %v73, 4294901760
    %350 = vmatpush.msra.mxu0 %v349
    %v351 = vand.u32 %v329, 4294901760
    %v352 = vsub.f32 %v329, %v351
    %v353 = vand.u32 %v352, 4294901760
    %v354 = vsub.f32 %v352, %v353
    %v355 = vand.u32 %v354, 4294901760
    %356 = vmatmul.f32.gmra.mxu0 %v355
    %v357 = vpop.f32.mrf.mxu0
    %v358 = vadd.f32 0.0, %v357
    %v359 = vand.u32 %v332, 4294901760
    %v360 = vsub.f32 %v332, %v359
    %v361 = vand.u32 %v360, 4294901760
    %v362 = vsub.f32 %v360, %v361
    %v363 = vand.u32 %v362, 4294901760
    %364 = vmatmul.f32.gmra.mxu0 %v363
    %v365 = vpop.f32.mrf.mxu0
    %v366 = vadd.f32 0.0, %v365
    %367 = vdwg.mxu0
    %368 = vmatpush.msra.mxu0 0.0
    %369 = vmatpush.msra.mxu0 0.0
    %370 = vmatpush.msra.mxu0 0.0
    %371 = vmatpush.msra.mxu0 0.0
    %372 = vmatpush.msra.mxu0 0.0
    %373 = vmatpush.msra.mxu0 0.0
    %374 = vmatpush.msra.mxu0 0.0
    %375 = vmatpush.msra.mxu0 0.0
    %376 = vmatpush.msra.mxu0 0.0
    %377 = vmatpush.msra.mxu0 0.0
    %378 = vmatpush.msra.mxu0 0.0
    %379 = vmatpush.msra.mxu0 0.0
    %380 = vmatpush.msra.mxu0 0.0
    %381 = vmatpush.msra.mxu0 0.0
    %382 = vmatpush.msra.mxu0 0.0
    %v383 = vand.u32 %v73, 4294901760
    %v384 = vsub.f32 %v73, %v383
    %v385 = vand.u32 %v384, 4294901760
    %v386 = vsub.f32 %v384, %v385
    %v387 = vand.u32 %v386, 4294901760
    %388 = vmatpush.msra.mxu0 %v387
    %v389 = vand.u32 %v329, 4294901760
    %390 = vmatmul.f32.gmra.mxu0 %v389
    %v391 = vpop.f32.mrf.mxu0
    %v392 = vadd.f32 %v358, %v391
    %v393 = vand.u32 %v332, 4294901760
    %394 = vmatmul.f32.gmra.mxu0 %v393
    %v395 = vpop.f32.mrf.mxu0
    %v396 = vadd.f32 %v366, %v395
    %397 = vdwg.mxu0
    %398 = vmatpush.msra.mxu0 0.0
    %399 = vmatpush.msra.mxu0 0.0
    %400 = vmatpush.msra.mxu0 0.0
    %401 = vmatpush.msra.mxu0 0.0
    %402 = vmatpush.msra.mxu0 0.0
    %403 = vmatpush.msra.mxu0 0.0
    %404 = vmatpush.msra.mxu0 0.0
    %405 = vmatpush.msra.mxu0 0.0
    %406 = vmatpush.msra.mxu0 0.0
    %407 = vmatpush.msra.mxu0 0.0
    %408 = vmatpush.msra.mxu0 0.0
    %409 = vmatpush.msra.mxu0 0.0
    %410 = vmatpush.msra.mxu0 0.0
    %411 = vmatpush.msra.mxu0 0.0
    %412 = vmatpush.msra.mxu0 0.0
    %v413 = vand.u32 %v73, 4294901760
    %v414 = vsub.f32 %v73, %v413
    %415 = vmatpush.msra.mxu0 %v414
    %v416 = vand.u32 %v329, 4294901760
    %v417 = vsub.f32 %v329, %v416
    %418 = vmatmul.f32.gmra.mxu0 %v417
    %v419 = vpop.f32.mrf.mxu0
    %v420 = vadd.f32 %v392, %v419
    %v421 = vand.u32 %v332, 4294901760
    %v422 = vsub.f32 %v332, %v421
    %423 = vmatmul.f32.gmra.mxu0 %v422
    %v424 = vpop.f32.mrf.mxu0
    %v425 = vadd.f32 %v396, %v424
    %426 = vdwg.mxu0
    %427 = vmatpush.msra.mxu0 0.0
    %428 = vmatpush.msra.mxu0 0.0
    %429 = vmatpush.msra.mxu0 0.0
    %430 = vmatpush.msra.mxu0 0.0
    %431 = vmatpush.msra.mxu0 0.0
    %432 = vmatpush.msra.mxu0 0.0
    %433 = vmatpush.msra.mxu0 0.0
    %434 = vmatpush.msra.mxu0 0.0
    %435 = vmatpush.msra.mxu0 0.0
    %436 = vmatpush.msra.mxu0 0.0
    %437 = vmatpush.msra.mxu0 0.0
    %438 = vmatpush.msra.mxu0 0.0
    %439 = vmatpush.msra.mxu0 0.0
    %440 = vmatpush.msra.mxu0 0.0
    %441 = vmatpush.msra.mxu0 0.0
    %v442 = vand.u32 %v73, 4294901760
    %443 = vmatpush.msra.mxu0 %v442
    %v444 = vand.u32 %v329, 4294901760
    %v445 = vsub.f32 %v329, %v444
    %v446 = vand.u32 %v445, 4294901760
    %447 = vmatmul.f32.gmra.mxu0 %v446
    %v448 = vpop.f32.mrf.mxu0
    %v449 = vadd.f32 %v420, %v448
    %v450 = vand.u32 %v332, 4294901760
    %v451 = vsub.f32 %v332, %v450
    %v452 = vand.u32 %v451, 4294901760
    %453 = vmatmul.f32.gmra.mxu0 %v452
    %v454 = vpop.f32.mrf.mxu0
    %v455 = vadd.f32 %v425, %v454
    %456 = vdwg.mxu0
    %457 = vmatpush.msra.mxu0 0.0
    %458 = vmatpush.msra.mxu0 0.0
    %459 = vmatpush.msra.mxu0 0.0
    %460 = vmatpush.msra.mxu0 0.0
    %461 = vmatpush.msra.mxu0 0.0
    %462 = vmatpush.msra.mxu0 0.0
    %463 = vmatpush.msra.mxu0 0.0
    %464 = vmatpush.msra.mxu0 0.0
    %465 = vmatpush.msra.mxu0 0.0
    %466 = vmatpush.msra.mxu0 0.0
    %467 = vmatpush.msra.mxu0 0.0
    %468 = vmatpush.msra.mxu0 0.0
    %469 = vmatpush.msra.mxu0 0.0
    %470 = vmatpush.msra.mxu0 0.0
    %471 = vmatpush.msra.mxu0 0.0
    %v472 = vand.u32 %v73, 4294901760
    %v473 = vsub.f32 %v73, %v472
    %v474 = vand.u32 %v473, 4294901760
    %475 = vmatpush.msra.mxu0 %v474
    %v476 = vand.u32 %v329, 4294901760
    %477 = vmatmul.f32.gmra.mxu0 %v476
    %v478 = vpop.f32.mrf.mxu0
    %v479 = vadd.f32 %v449, %v478
    %v480 = vand.u32 %v332, 4294901760
    %481 = vmatmul.f32.gmra.mxu0 %v480
    %v482 = vpop.f32.mrf.mxu0
    %v483 = vadd.f32 %v455, %v482
    %484 = vdwg.mxu0
    %485 = vmatpush.msra.mxu0 0.0
    %486 = vmatpush.msra.mxu0 0.0
    %487 = vmatpush.msra.mxu0 0.0
    %488 = vmatpush.msra.mxu0 0.0
    %489 = vmatpush.msra.mxu0 0.0
    %490 = vmatpush.msra.mxu0 0.0
    %491 = vmatpush.msra.mxu0 0.0
    %492 = vmatpush.msra.mxu0 0.0
    %493 = vmatpush.msra.mxu0 0.0
    %494 = vmatpush.msra.mxu0 0.0
    %495 = vmatpush.msra.mxu0 0.0
    %496 = vmatpush.msra.mxu0 0.0
    %497 = vmatpush.msra.mxu0 0.0
    %498 = vmatpush.msra.mxu0 0.0
    %499 = vmatpush.msra.mxu0 0.0
    %v500 = vand.u32 %v73, 4294901760
    %501 = vmatpush.msra.mxu0 %v500
    %v502 = vand.u32 %v329, 4294901760
    %503 = vmatmul.f32.gmra.mxu0 %v502
    %v504 = vpop.f32.mrf.mxu0
    %v505 = vadd.f32 %v479, %v504
    %v506 = vand.u32 %v332, 4294901760
    %507 = vmatmul.f32.gmra.mxu0 %v506
    %v508 = vpop.f32.mrf.mxu0
    %v509 = vadd.f32 %v483, %v508
    %510 = vdwg.mxu0
    %511 = vxpose.xlu0.b32.start [1/16] %v70, 128
    %512 = vxpose.xlu0.b32.cont [2/16] 0.0, 128
    %513 = vxpose.xlu0.b32.cont [3/16] 0.0, 128
    %514 = vxpose.xlu0.b32.cont [4/16] 0.0, 128
    %515 = vxpose.xlu0.b32.cont [5/16] 0.0, 128
    %516 = vxpose.xlu0.b32.cont [6/16] 0.0, 128
    %517 = vxpose.xlu0.b32.cont [7/16] 0.0, 128
    %518 = vxpose.xlu0.b32.cont [8/16] 0.0, 128
    %519 = vxpose.xlu0.b32.cont [9/16] 0.0, 128
    %520 = vxpose.xlu0.b32.cont [10/16] 0.0, 128
    %521 = vxpose.xlu0.b32.cont [11/16] 0.0, 128
    %522 = vxpose.xlu0.b32.cont [12/16] 0.0, 128
    %523 = vxpose.xlu0.b32.cont [13/16] 0.0, 128
    %524 = vxpose.xlu0.b32.cont [14/16] 0.0, 128
    %525 = vxpose.xlu0.b32.cont [15/16] 0.0, 128
    %526 = vxpose.xlu0.b32.end [16/16] 0.0, 128
    %v527 = vpop.trf.xlu0
    %v528 = vpop.trf.xlu0
    %v529 = vpop.trf.xlu0
    %v530 = vpop.trf.xlu0
    %v531 = vpop.trf.xlu0
    %v532 = vpop.trf.xlu0
    %v533 = vpop.trf.xlu0
    %v534 = vpop.trf.xlu0
    %v535 = vpop.trf.xlu0
    %v536 = vpop.trf.xlu0
    %v537 = vpop.trf.xlu0
    %v538 = vpop.trf.xlu0
    %v539 = vpop.trf.xlu0
    %v540 = vpop.trf.xlu0
    %v541 = vpop.trf.xlu0
    %v542 = vpop.trf.xlu0
    %v544 = vsel %vm112, %v527, 0
    %v547 = vsel %vm112, %v528, 0
    %549 = vmatpush.msra.mxu0 0.0
    %550 = vmatpush.msra.mxu0 0.0
    %551 = vmatpush.msra.mxu0 0.0
    %552 = vmatpush.msra.mxu0 0.0
    %553 = vmatpush.msra.mxu0 0.0
    %554 = vmatpush.msra.mxu0 0.0
    %555 = vmatpush.msra.mxu0 0.0
    %556 = vmatpush.msra.mxu0 0.0
    %557 = vmatpush.msra.mxu0 0.0
    %558 = vmatpush.msra.mxu0 0.0
    %559 = vmatpush.msra.mxu0 0.0
    %560 = vmatpush.msra.mxu0 0.0
    %561 = vmatpush.msra.mxu0 0.0
    %562 = vmatpush.msra.mxu0 0.0
    %563 = vmatpush.msra.mxu0 0.0
    %v564 = vand.u32 %v74, 4294901760
    %565 = vmatpush.msra.mxu0 %v564
    %v566 = vand.u32 %v544, 4294901760
    %v567 = vsub.f32 %v544, %v566
    %v568 = vand.u32 %v567, 4294901760
    %v569 = vsub.f32 %v567, %v568
    %v570 = vand.u32 %v569, 4294901760
    %571 = vmatmul.f32.gmra.mxu0 %v570
    %v572 = vpop.f32.mrf.mxu0
    %v573 = vadd.f32 0.0, %v572
    %v574 = vand.u32 %v547, 4294901760
    %v575 = vsub.f32 %v547, %v574
    %v576 = vand.u32 %v575, 4294901760
    %v577 = vsub.f32 %v575, %v576
    %v578 = vand.u32 %v577, 4294901760
    %579 = vmatmul.f32.gmra.mxu0 %v578
    %v580 = vpop.f32.mrf.mxu0
    %v581 = vadd.f32 0.0, %v580
    %582 = vdwg.mxu0
    %583 = vmatpush.msra.mxu0 0.0
    %584 = vmatpush.msra.mxu0 0.0
    %585 = vmatpush.msra.mxu0 0.0
    %586 = vmatpush.msra.mxu0 0.0
    %587 = vmatpush.msra.mxu0 0.0
    %588 = vmatpush.msra.mxu0 0.0
    %589 = vmatpush.msra.mxu0 0.0
    %590 = vmatpush.msra.mxu0 0.0
    %591 = vmatpush.msra.mxu0 0.0
    %592 = vmatpush.msra.mxu0 0.0
    %593 = vmatpush.msra.mxu0 0.0
    %594 = vmatpush.msra.mxu0 0.0
    %595 = vmatpush.msra.mxu0 0.0
    %596 = vmatpush.msra.mxu0 0.0
    %597 = vmatpush.msra.mxu0 0.0
    %v598 = vand.u32 %v74, 4294901760
    %v599 = vsub.f32 %v74, %v598
    %v600 = vand.u32 %v599, 4294901760
    %v601 = vsub.f32 %v599, %v600
    %v602 = vand.u32 %v601, 4294901760
    %603 = vmatpush.msra.mxu0 %v602
    %v604 = vand.u32 %v544, 4294901760
    %605 = vmatmul.f32.gmra.mxu0 %v604
    %v606 = vpop.f32.mrf.mxu0
    %v607 = vadd.f32 %v573, %v606
    %v608 = vand.u32 %v547, 4294901760
    %609 = vmatmul.f32.gmra.mxu0 %v608
    %v610 = vpop.f32.mrf.mxu0
    %v611 = vadd.f32 %v581, %v610
    %612 = vdwg.mxu0
    %613 = vmatpush.msra.mxu0 0.0
    %614 = vmatpush.msra.mxu0 0.0
    %615 = vmatpush.msra.mxu0 0.0
    %616 = vmatpush.msra.mxu0 0.0
    %617 = vmatpush.msra.mxu0 0.0
    %618 = vmatpush.msra.mxu0 0.0
    %619 = vmatpush.msra.mxu0 0.0
    %620 = vmatpush.msra.mxu0 0.0
    %621 = vmatpush.msra.mxu0 0.0
    %622 = vmatpush.msra.mxu0 0.0
    %623 = vmatpush.msra.mxu0 0.0
    %624 = vmatpush.msra.mxu0 0.0
    %625 = vmatpush.msra.mxu0 0.0
    %626 = vmatpush.msra.mxu0 0.0
    %627 = vmatpush.msra.mxu0 0.0
    %v628 = vand.u32 %v74, 4294901760
    %v629 = vsub.f32 %v74, %v628
    %630 = vmatpush.msra.mxu0 %v629
    %v631 = vand.u32 %v544, 4294901760
    %v632 = vsub.f32 %v544, %v631
    %633 = vmatmul.f32.gmra.mxu0 %v632
    %v634 = vpop.f32.mrf.mxu0
    %v635 = vadd.f32 %v607, %v634
    %v636 = vand.u32 %v547, 4294901760
    %v637 = vsub.f32 %v547, %v636
    %638 = vmatmul.f32.gmra.mxu0 %v637
    %v639 = vpop.f32.mrf.mxu0
    %v640 = vadd.f32 %v611, %v639
    %641 = vdwg.mxu0
    %642 = vmatpush.msra.mxu0 0.0
    %643 = vmatpush.msra.mxu0 0.0
    %644 = vmatpush.msra.mxu0 0.0
    %645 = vmatpush.msra.mxu0 0.0
    %646 = vmatpush.msra.mxu0 0.0
    %647 = vmatpush.msra.mxu0 0.0
    %648 = vmatpush.msra.mxu0 0.0
    %649 = vmatpush.msra.mxu0 0.0
    %650 = vmatpush.msra.mxu0 0.0
    %651 = vmatpush.msra.mxu0 0.0
    %652 = vmatpush.msra.mxu0 0.0
    %653 = vmatpush.msra.mxu0 0.0
    %654 = vmatpush.msra.mxu0 0.0
    %655 = vmatpush.msra.mxu0 0.0
    %656 = vmatpush.msra.mxu0 0.0
    %v657 = vand.u32 %v74, 4294901760
    %658 = vmatpush.msra.mxu0 %v657
    %v659 = vand.u32 %v544, 4294901760
    %v660 = vsub.f32 %v544, %v659
    %v661 = vand.u32 %v660, 4294901760
    %662 = vmatmul.f32.gmra.mxu0 %v661
    %v663 = vpop.f32.mrf.mxu0
    %v664 = vadd.f32 %v635, %v663
    %v665 = vand.u32 %v547, 4294901760
    %v666 = vsub.f32 %v547, %v665
    %v667 = vand.u32 %v666, 4294901760
    %668 = vmatmul.f32.gmra.mxu0 %v667
    %v669 = vpop.f32.mrf.mxu0
    %v670 = vadd.f32 %v640, %v669
    %671 = vdwg.mxu0
    %672 = vmatpush.msra.mxu0 0.0
    %673 = vmatpush.msra.mxu0 0.0
    %674 = vmatpush.msra.mxu0 0.0
    %675 = vmatpush.msra.mxu0 0.0
    %676 = vmatpush.msra.mxu0 0.0
    %677 = vmatpush.msra.mxu0 0.0
    %678 = vmatpush.msra.mxu0 0.0
    %679 = vmatpush.msra.mxu0 0.0
    %680 = vmatpush.msra.mxu0 0.0
    %681 = vmatpush.msra.mxu0 0.0
    %682 = vmatpush.msra.mxu0 0.0
    %683 = vmatpush.msra.mxu0 0.0
    %684 = vmatpush.msra.mxu0 0.0
    %685 = vmatpush.msra.mxu0 0.0
    %686 = vmatpush.msra.mxu0 0.0
    %v687 = vand.u32 %v74, 4294901760
    %v688 = vsub.f32 %v74, %v687
    %v689 = vand.u32 %v688, 4294901760
    %690 = vmatpush.msra.mxu0 %v689
    %v691 = vand.u32 %v544, 4294901760
    %692 = vmatmul.f32.gmra.mxu0 %v691
    %v693 = vpop.f32.mrf.mxu0
    %v694 = vadd.f32 %v664, %v693
    %v695 = vand.u32 %v547, 4294901760
    %696 = vmatmul.f32.gmra.mxu0 %v695
    %v697 = vpop.f32.mrf.mxu0
    %v698 = vadd.f32 %v670, %v697
    %699 = vdwg.mxu0
    %700 = vmatpush.msra.mxu0 0.0
    %701 = vmatpush.msra.mxu0 0.0
    %702 = vmatpush.msra.mxu0 0.0
    %703 = vmatpush.msra.mxu0 0.0
    %704 = vmatpush.msra.mxu0 0.0
    %705 = vmatpush.msra.mxu0 0.0
    %706 = vmatpush.msra.mxu0 0.0
    %707 = vmatpush.msra.mxu0 0.0
    %708 = vmatpush.msra.mxu0 0.0
    %709 = vmatpush.msra.mxu0 0.0
    %710 = vmatpush.msra.mxu0 0.0
    %711 = vmatpush.msra.mxu0 0.0
    %712 = vmatpush.msra.mxu0 0.0
    %713 = vmatpush.msra.mxu0 0.0
    %714 = vmatpush.msra.mxu0 0.0
    %v715 = vand.u32 %v74, 4294901760
    %716 = vmatpush.msra.mxu0 %v715
    %v717 = vand.u32 %v544, 4294901760
    %718 = vmatmul.f32.gmra.mxu0 %v717
    %v719 = vpop.f32.mrf.mxu0
    %v720 = vadd.f32 %v694, %v719
    %v721 = vand.u32 %v547, 4294901760
    %722 = vmatmul.f32.gmra.mxu0 %v721
    %v723 = vpop.f32.mrf.mxu0
    %v724 = vadd.f32 %v698, %v723
    %725 = vdwg.mxu0
    %726 = vxpose.xlu0.b32.start [1/16] %v71, 128
    %727 = vxpose.xlu0.b32.cont [2/16] 0.0, 128
    %728 = vxpose.xlu0.b32.cont [3/16] 0.0, 128
    %729 = vxpose.xlu0.b32.cont [4/16] 0.0, 128
    %730 = vxpose.xlu0.b32.cont [5/16] 0.0, 128
    %731 = vxpose.xlu0.b32.cont [6/16] 0.0, 128
    %732 = vxpose.xlu0.b32.cont [7/16] 0.0, 128
    %733 = vxpose.xlu0.b32.cont [8/16] 0.0, 128
    %734 = vxpose.xlu0.b32.cont [9/16] 0.0, 128
    %735 = vxpose.xlu0.b32.cont [10/16] 0.0, 128
    %736 = vxpose.xlu0.b32.cont [11/16] 0.0, 128
    %737 = vxpose.xlu0.b32.cont [12/16] 0.0, 128
    %738 = vxpose.xlu0.b32.cont [13/16] 0.0, 128
    %739 = vxpose.xlu0.b32.cont [14/16] 0.0, 128
    %740 = vxpose.xlu0.b32.cont [15/16] 0.0, 128
    %741 = vxpose.xlu0.b32.end [16/16] 0.0, 128
    %v742 = vpop.trf.xlu0
    %v743 = vpop.trf.xlu0
    %v744 = vpop.trf.xlu0
    %v745 = vpop.trf.xlu0
    %v746 = vpop.trf.xlu0
    %v747 = vpop.trf.xlu0
    %v748 = vpop.trf.xlu0
    %v749 = vpop.trf.xlu0
    %v750 = vpop.trf.xlu0
    %v751 = vpop.trf.xlu0
    %v752 = vpop.trf.xlu0
    %v753 = vpop.trf.xlu0
    %v754 = vpop.trf.xlu0
    %v755 = vpop.trf.xlu0
    %v756 = vpop.trf.xlu0
    %v757 = vpop.trf.xlu0
    %v759 = vsel %vm112, %v742, 0
    %v762 = vsel %vm112, %v743, 0
    %764 = vmatpush.msra.mxu0 0.0
    %765 = vmatpush.msra.mxu0 0.0
    %766 = vmatpush.msra.mxu0 0.0
    %767 = vmatpush.msra.mxu0 0.0
    %768 = vmatpush.msra.mxu0 0.0
    %769 = vmatpush.msra.mxu0 0.0
    %770 = vmatpush.msra.mxu0 0.0
    %771 = vmatpush.msra.mxu0 0.0
    %772 = vmatpush.msra.mxu0 0.0
    %773 = vmatpush.msra.mxu0 0.0
    %774 = vmatpush.msra.mxu0 0.0
    %775 = vmatpush.msra.mxu0 0.0
    %776 = vmatpush.msra.mxu0 0.0
    %777 = vmatpush.msra.mxu0 0.0
    %778 = vmatpush.msra.mxu0 0.0
    %v779 = vand.u32 %v75, 4294901760
    %780 = vmatpush.msra.mxu0 %v779
    %v781 = vand.u32 %v759, 4294901760
    %v782 = vsub.f32 %v759, %v781
    %v783 = vand.u32 %v782, 4294901760
    %v784 = vsub.f32 %v782, %v783
    %v785 = vand.u32 %v784, 4294901760
    %786 = vmatmul.f32.gmra.mxu0 %v785
    %v787 = vpop.f32.mrf.mxu0
    %v788 = vadd.f32 0.0, %v787
    %v789 = vand.u32 %v762, 4294901760
    %v790 = vsub.f32 %v762, %v789
    %v791 = vand.u32 %v790, 4294901760
    %v792 = vsub.f32 %v790, %v791
    %v793 = vand.u32 %v792, 4294901760
    %794 = vmatmul.f32.gmra.mxu0 %v793
    %v795 = vpop.f32.mrf.mxu0
    %v796 = vadd.f32 0.0, %v795
    %797 = vdwg.mxu0
    %798 = vmatpush.msra.mxu0 0.0
    %799 = vmatpush.msra.mxu0 0.0
    %800 = vmatpush.msra.mxu0 0.0
    %801 = vmatpush.msra.mxu0 0.0
    %802 = vmatpush.msra.mxu0 0.0
    %803 = vmatpush.msra.mxu0 0.0
    %804 = vmatpush.msra.mxu0 0.0
    %805 = vmatpush.msra.mxu0 0.0
    %806 = vmatpush.msra.mxu0 0.0
    %807 = vmatpush.msra.mxu0 0.0
    %808 = vmatpush.msra.mxu0 0.0
    %809 = vmatpush.msra.mxu0 0.0
    %810 = vmatpush.msra.mxu0 0.0
    %811 = vmatpush.msra.mxu0 0.0
    %812 = vmatpush.msra.mxu0 0.0
    %v813 = vand.u32 %v75, 4294901760
    %v814 = vsub.f32 %v75, %v813
    %v815 = vand.u32 %v814, 4294901760
    %v816 = vsub.f32 %v814, %v815
    %v817 = vand.u32 %v816, 4294901760
    %818 = vmatpush.msra.mxu0 %v817
    %v819 = vand.u32 %v759, 4294901760
    %820 = vmatmul.f32.gmra.mxu0 %v819
    %v821 = vpop.f32.mrf.mxu0
    %v822 = vadd.f32 %v788, %v821
    %v823 = vand.u32 %v762, 4294901760
    %824 = vmatmul.f32.gmra.mxu0 %v823
    %v825 = vpop.f32.mrf.mxu0
    %v826 = vadd.f32 %v796, %v825
    %827 = vdwg.mxu0
    %828 = vmatpush.msra.mxu0 0.0
    %829 = vmatpush.msra.mxu0 0.0
    %830 = vmatpush.msra.mxu0 0.0
    %831 = vmatpush.msra.mxu0 0.0
    %832 = vmatpush.msra.mxu0 0.0
    %833 = vmatpush.msra.mxu0 0.0
    %834 = vmatpush.msra.mxu0 0.0
    %835 = vmatpush.msra.mxu0 0.0
    %836 = vmatpush.msra.mxu0 0.0
    %837 = vmatpush.msra.mxu0 0.0
    %838 = vmatpush.msra.mxu0 0.0
    %839 = vmatpush.msra.mxu0 0.0
    %840 = vmatpush.msra.mxu0 0.0
    %841 = vmatpush.msra.mxu0 0.0
    %842 = vmatpush.msra.mxu0 0.0
    %v843 = vand.u32 %v75, 4294901760
    %v844 = vsub.f32 %v75, %v843
    %845 = vmatpush.msra.mxu0 %v844
    %v846 = vand.u32 %v759, 4294901760
    %v847 = vsub.f32 %v759, %v846
    %848 = vmatmul.f32.gmra.mxu0 %v847
    %v849 = vpop.f32.mrf.mxu0
    %v850 = vadd.f32 %v822, %v849
    %v851 = vand.u32 %v762, 4294901760
    %v852 = vsub.f32 %v762, %v851
    %853 = vmatmul.f32.gmra.mxu0 %v852
    %v854 = vpop.f32.mrf.mxu0
    %v855 = vadd.f32 %v826, %v854
    %856 = vdwg.mxu0
    %857 = vmatpush.msra.mxu0 0.0
    %858 = vmatpush.msra.mxu0 0.0
    %859 = vmatpush.msra.mxu0 0.0
    %860 = vmatpush.msra.mxu0 0.0
    %861 = vmatpush.msra.mxu0 0.0
    %862 = vmatpush.msra.mxu0 0.0
    %863 = vmatpush.msra.mxu0 0.0
    %864 = vmatpush.msra.mxu0 0.0
    %865 = vmatpush.msra.mxu0 0.0
    %866 = vmatpush.msra.mxu0 0.0
    %867 = vmatpush.msra.mxu0 0.0
    %868 = vmatpush.msra.mxu0 0.0
    %869 = vmatpush.msra.mxu0 0.0
    %870 = vmatpush.msra.mxu0 0.0
    %871 = vmatpush.msra.mxu0 0.0
    %v872 = vand.u32 %v75, 4294901760
    %873 = vmatpush.msra.mxu0 %v872
    %v874 = vand.u32 %v759, 4294901760
    %v875 = vsub.f32 %v759, %v874
    %v876 = vand.u32 %v875, 4294901760
    %877 = vmatmul.f32.gmra.mxu0 %v876
    %v878 = vpop.f32.mrf.mxu0
    %v879 = vadd.f32 %v850, %v878
    %v880 = vand.u32 %v762, 4294901760
    %v881 = vsub.f32 %v762, %v880
    %v882 = vand.u32 %v881, 4294901760
    %883 = vmatmul.f32.gmra.mxu0 %v882
    %v884 = vpop.f32.mrf.mxu0
    %v885 = vadd.f32 %v855, %v884
    %886 = vdwg.mxu0
    %887 = vmatpush.msra.mxu0 0.0
    %888 = vmatpush.msra.mxu0 0.0
    %889 = vmatpush.msra.mxu0 0.0
    %890 = vmatpush.msra.mxu0 0.0
    %891 = vmatpush.msra.mxu0 0.0
    %892 = vmatpush.msra.mxu0 0.0
    %893 = vmatpush.msra.mxu0 0.0
    %894 = vmatpush.msra.mxu0 0.0
    %895 = vmatpush.msra.mxu0 0.0
    %896 = vmatpush.msra.mxu0 0.0
    %897 = vmatpush.msra.mxu0 0.0
    %898 = vmatpush.msra.mxu0 0.0
    %899 = vmatpush.msra.mxu0 0.0
    %900 = vmatpush.msra.mxu0 0.0
    %901 = vmatpush.msra.mxu0 0.0
    %v902 = vand.u32 %v75, 4294901760
    %v903 = vsub.f32 %v75, %v902
    %v904 = vand.u32 %v903, 4294901760
    %905 = vmatpush.msra.mxu0 %v904
    %v906 = vand.u32 %v759, 4294901760
    %907 = vmatmul.f32.gmra.mxu0 %v906
    %v908 = vpop.f32.mrf.mxu0
    %v909 = vadd.f32 %v879, %v908
    %v910 = vand.u32 %v762, 4294901760
    %911 = vmatmul.f32.gmra.mxu0 %v910
    %v912 = vpop.f32.mrf.mxu0
    %v913 = vadd.f32 %v885, %v912
    %914 = vdwg.mxu0
    %915 = vmatpush.msra.mxu0 0.0
    %916 = vmatpush.msra.mxu0 0.0
    %917 = vmatpush.msra.mxu0 0.0
    %918 = vmatpush.msra.mxu0 0.0
    %919 = vmatpush.msra.mxu0 0.0
    %920 = vmatpush.msra.mxu0 0.0
    %921 = vmatpush.msra.mxu0 0.0
    %922 = vmatpush.msra.mxu0 0.0
    %923 = vmatpush.msra.mxu0 0.0
    %924 = vmatpush.msra.mxu0 0.0
    %925 = vmatpush.msra.mxu0 0.0
    %926 = vmatpush.msra.mxu0 0.0
    %927 = vmatpush.msra.mxu0 0.0
    %928 = vmatpush.msra.mxu0 0.0
    %929 = vmatpush.msra.mxu0 0.0
    %v930 = vand.u32 %v75, 4294901760
    %931 = vmatpush.msra.mxu0 %v930
    %v932 = vand.u32 %v759, 4294901760
    %933 = vmatmul.f32.gmra.mxu0 %v932
    %v934 = vpop.f32.mrf.mxu0
    %v935 = vadd.f32 %v909, %v934
    %v936 = vand.u32 %v762, 4294901760
    %937 = vmatmul.f32.gmra.mxu0 %v936
    %v938 = vpop.f32.mrf.mxu0
    %v939 = vadd.f32 %v913, %v938
    %940 = vdwg.mxu0
    %vm941 = vcmask 130048
    %v942 = vsel %vm941, %v290, -inf
    %943 = vmax.xlane.f32.xlu0 %v942
    %v944 = vpop.xlane.xlu0 %943
    %v945 = vsel %vm941, %v294, -inf
    %946 = vmax.xlane.f32.xlu0 %v945
    %v947 = vpop.xlane.xlu0 %946
    %v948 = vsel %vm941, %v505, -inf
    %949 = vmax.xlane.f32.xlu0 %v948
    %v950 = vpop.xlane.xlu0 %949
    %v951 = vsel %vm941, %v509, -inf
    %952 = vmax.xlane.f32.xlu0 %v951
    %v953 = vpop.xlane.xlu0 %952
    %v954 = vsel %vm941, %v720, -inf
    %955 = vmax.xlane.f32.xlu0 %v954
    %v956 = vpop.xlane.xlu0 %955
    %v957 = vsel %vm941, %v724, -inf
    %958 = vmax.xlane.f32.xlu0 %v957
    %v959 = vpop.xlane.xlu0 %958
    %v960 = vsel %vm941, %v935, -inf
    %961 = vmax.xlane.f32.xlu0 %v960
    %v962 = vpop.xlane.xlu0 %961
    %v963 = vsel %vm941, %v939, -inf
    %964 = vmax.xlane.f32.xlu0 %v963
    %v965 = vpop.xlane.xlu0 %964
    %v966 = vsub.f32 %v290, %v944
    %v967 = vsub.f32 %v294, %v947
    %v968 = vsub.f32 %v505, %v950
    %v969 = vsub.f32 %v509, %v953
    %v970 = vsub.f32 %v720, %v956
    %v971 = vsub.f32 %v724, %v959
    %v972 = vsub.f32 %v935, %v962
    %v973 = vsub.f32 %v939, %v965
    %v974 = vmul.f32 %v966, 1.442695
    %v975 = vpow.pop %v974
    %v976 = vmul.f32 %v967, 1.442695
    %v977 = vpow.pop %v976
    %v978 = vmul.f32 %v968, 1.442695
    %v979 = vpow.pop %v978
    %v980 = vmul.f32 %v969, 1.442695
    %v981 = vpow.pop %v980
    %v982 = vmul.f32 %v970, 1.442695
    %v983 = vpow.pop %v982
    %v984 = vmul.f32 %v971, 1.442695
    %v985 = vpow.pop %v984
    %v986 = vmul.f32 %v972, 1.442695
    %v987 = vpow.pop %v986
    %v988 = vmul.f32 %v973, 1.442695
    %v989 = vpow.pop %v988
    %v990 = vsel %vm941, %v975, 0.0
    %991 = vadd.xlane.f32.xlu0 %v990
    %v992 = vpop.xlane.xlu0 %991
    %v993 = vsel %vm941, %v977, 0.0
    %994 = vadd.xlane.f32.xlu0 %v993
    %v995 = vpop.xlane.xlu0 %994
    %v996 = vsel %vm941, %v979, 0.0
    %997 = vadd.xlane.f32.xlu0 %v996
    %v998 = vpop.xlane.xlu0 %997
    %v999 = vsel %vm941, %v981, 0.0
    %1000 = vadd.xlane.f32.xlu0 %v999
    %v1001 = vpop.xlane.xlu0 %1000
    %v1002 = vsel %vm941, %v983, 0.0
    %1003 = vadd.xlane.f32.xlu0 %v1002
    %v1004 = vpop.xlane.xlu0 %1003
    %v1005 = vsel %vm941, %v985, 0.0
    %1006 = vadd.xlane.f32.xlu0 %v1005
    %v1007 = vpop.xlane.xlu0 %1006
    %v1008 = vsel %vm941, %v987, 0.0
    %1009 = vadd.xlane.f32.xlu0 %v1008
    %v1010 = vpop.xlane.xlu0 %1009
    %v1011 = vsel %vm941, %v989, 0.0
    %1012 = vadd.xlane.f32.xlu0 %v1011
    %v1013 = vpop.xlane.xlu0 %1012
    %v1015 = vsel %vm941, %v76, 0
    %v1018 = vsel %vm941, %v975, 0
    %v1021 = vsel %vm941, %v977, 0
    %1023 = vmatpush.xpose.msra.mxu0 0.0
    %1024 = vmatpush.xpose.msra.mxu0 0.0
    %1025 = vmatpush.xpose.msra.mxu0 0.0
    %1026 = vmatpush.xpose.msra.mxu0 0.0
    %1027 = vmatpush.xpose.msra.mxu0 0.0
    %1028 = vmatpush.xpose.msra.mxu0 0.0
    %1029 = vmatpush.xpose.msra.mxu0 0.0
    %1030 = vmatpush.xpose.msra.mxu0 0.0
    %1031 = vmatpush.xpose.msra.mxu0 0.0
    %1032 = vmatpush.xpose.msra.mxu0 0.0
    %1033 = vmatpush.xpose.msra.mxu0 0.0
    %1034 = vmatpush.xpose.msra.mxu0 0.0
    %1035 = vmatpush.xpose.msra.mxu0 0.0
    %1036 = vmatpush.xpose.msra.mxu0 0.0
    %v1037 = vand.u32 %v1021, 4294901760
    %1038 = vmatpush.xpose.msra.mxu0 %v1037
    %v1039 = vand.u32 %v1018, 4294901760
    %1040 = vmatpush.xpose.msra.mxu0 %v1039
    %v1041 = vand.u32 %v1015, 4294901760
    %v1042 = vsub.f32 %v1015, %v1041
    %v1043 = vand.u32 %v1042, 4294901760
    %v1044 = vsub.f32 %v1042, %v1043
    %v1045 = vand.u32 %v1044, 4294901760
    %1046 = vmatmul.f32.gmra.mxu0 %v1045
    %v1047 = vpop.f32.mrf.mxu0
    %v1048 = vadd.f32 0.0, %v1047
    %1049 = vdwg.mxu0
    %1050 = vmatpush.xpose.msra.mxu0 0.0
    %1051 = vmatpush.xpose.msra.mxu0 0.0
    %1052 = vmatpush.xpose.msra.mxu0 0.0
    %1053 = vmatpush.xpose.msra.mxu0 0.0
    %1054 = vmatpush.xpose.msra.mxu0 0.0
    %1055 = vmatpush.xpose.msra.mxu0 0.0
    %1056 = vmatpush.xpose.msra.mxu0 0.0
    %1057 = vmatpush.xpose.msra.mxu0 0.0
    %1058 = vmatpush.xpose.msra.mxu0 0.0
    %1059 = vmatpush.xpose.msra.mxu0 0.0
    %1060 = vmatpush.xpose.msra.mxu0 0.0
    %1061 = vmatpush.xpose.msra.mxu0 0.0
    %1062 = vmatpush.xpose.msra.mxu0 0.0
    %1063 = vmatpush.xpose.msra.mxu0 0.0
    %v1064 = vand.u32 %v1021, 4294901760
    %v1065 = vsub.f32 %v1021, %v1064
    %v1066 = vand.u32 %v1065, 4294901760
    %v1067 = vsub.f32 %v1065, %v1066
    %v1068 = vand.u32 %v1067, 4294901760
    %1069 = vmatpush.xpose.msra.mxu0 %v1068
    %v1070 = vand.u32 %v1018, 4294901760
    %v1071 = vsub.f32 %v1018, %v1070
    %v1072 = vand.u32 %v1071, 4294901760
    %v1073 = vsub.f32 %v1071, %v1072
    %v1074 = vand.u32 %v1073, 4294901760
    %1075 = vmatpush.xpose.msra.mxu0 %v1074
    %v1076 = vand.u32 %v1015, 4294901760
    %1077 = vmatmul.f32.gmra.mxu0 %v1076
    %v1078 = vpop.f32.mrf.mxu0
    %v1079 = vadd.f32 %v1048, %v1078
    %1080 = vdwg.mxu0
    %1081 = vmatpush.xpose.msra.mxu0 0.0
    %1082 = vmatpush.xpose.msra.mxu0 0.0
    %1083 = vmatpush.xpose.msra.mxu0 0.0
    %1084 = vmatpush.xpose.msra.mxu0 0.0
    %1085 = vmatpush.xpose.msra.mxu0 0.0
    %1086 = vmatpush.xpose.msra.mxu0 0.0
    %1087 = vmatpush.xpose.msra.mxu0 0.0
    %1088 = vmatpush.xpose.msra.mxu0 0.0
    %1089 = vmatpush.xpose.msra.mxu0 0.0
    %1090 = vmatpush.xpose.msra.mxu0 0.0
    %1091 = vmatpush.xpose.msra.mxu0 0.0
    %1092 = vmatpush.xpose.msra.mxu0 0.0
    %1093 = vmatpush.xpose.msra.mxu0 0.0
    %1094 = vmatpush.xpose.msra.mxu0 0.0
    %v1095 = vand.u32 %v1021, 4294901760
    %v1096 = vsub.f32 %v1021, %v1095
    %1097 = vmatpush.xpose.msra.mxu0 %v1096
    %v1098 = vand.u32 %v1018, 4294901760
    %v1099 = vsub.f32 %v1018, %v1098
    %1100 = vmatpush.xpose.msra.mxu0 %v1099
    %v1101 = vand.u32 %v1015, 4294901760
    %v1102 = vsub.f32 %v1015, %v1101
    %1103 = vmatmul.f32.gmra.mxu0 %v1102
    %v1104 = vpop.f32.mrf.mxu0
    %v1105 = vadd.f32 %v1079, %v1104
    %1106 = vdwg.mxu0
    %1107 = vmatpush.xpose.msra.mxu0 0.0
    %1108 = vmatpush.xpose.msra.mxu0 0.0
    %1109 = vmatpush.xpose.msra.mxu0 0.0
    %1110 = vmatpush.xpose.msra.mxu0 0.0
    %1111 = vmatpush.xpose.msra.mxu0 0.0
    %1112 = vmatpush.xpose.msra.mxu0 0.0
    %1113 = vmatpush.xpose.msra.mxu0 0.0
    %1114 = vmatpush.xpose.msra.mxu0 0.0
    %1115 = vmatpush.xpose.msra.mxu0 0.0
    %1116 = vmatpush.xpose.msra.mxu0 0.0
    %1117 = vmatpush.xpose.msra.mxu0 0.0
    %1118 = vmatpush.xpose.msra.mxu0 0.0
    %1119 = vmatpush.xpose.msra.mxu0 0.0
    %1120 = vmatpush.xpose.msra.mxu0 0.0
    %v1121 = vand.u32 %v1021, 4294901760
    %1122 = vmatpush.xpose.msra.mxu0 %v1121
    %v1123 = vand.u32 %v1018, 4294901760
    %1124 = vmatpush.xpose.msra.mxu0 %v1123
    %v1125 = vand.u32 %v1015, 4294901760
    %v1126 = vsub.f32 %v1015, %v1125
    %v1127 = vand.u32 %v1126, 4294901760
    %1128 = vmatmul.f32.gmra.mxu0 %v1127
    %v1129 = vpop.f32.mrf.mxu0
    %v1130 = vadd.f32 %v1105, %v1129
    %1131 = vdwg.mxu0
    %1132 = vmatpush.xpose.msra.mxu0 0.0
    %1133 = vmatpush.xpose.msra.mxu0 0.0
    %1134 = vmatpush.xpose.msra.mxu0 0.0
    %1135 = vmatpush.xpose.msra.mxu0 0.0
    %1136 = vmatpush.xpose.msra.mxu0 0.0
    %1137 = vmatpush.xpose.msra.mxu0 0.0
    %1138 = vmatpush.xpose.msra.mxu0 0.0
    %1139 = vmatpush.xpose.msra.mxu0 0.0
    %1140 = vmatpush.xpose.msra.mxu0 0.0
    %1141 = vmatpush.xpose.msra.mxu0 0.0
    %1142 = vmatpush.xpose.msra.mxu0 0.0
    %1143 = vmatpush.xpose.msra.mxu0 0.0
    %1144 = vmatpush.xpose.msra.mxu0 0.0
    %1145 = vmatpush.xpose.msra.mxu0 0.0
    %v1146 = vand.u32 %v1021, 4294901760
    %v1147 = vsub.f32 %v1021, %v1146
    %v1148 = vand.u32 %v1147, 4294901760
    %1149 = vmatpush.xpose.msra.mxu0 %v1148
    %v1150 = vand.u32 %v1018, 4294901760
    %v1151 = vsub.f32 %v1018, %v1150
    %v1152 = vand.u32 %v1151, 4294901760
    %1153 = vmatpush.xpose.msra.mxu0 %v1152
    %v1154 = vand.u32 %v1015, 4294901760
    %1155 = vmatmul.f32.gmra.mxu0 %v1154
    %v1156 = vpop.f32.mrf.mxu0
    %v1157 = vadd.f32 %v1130, %v1156
    %1158 = vdwg.mxu0
    %1159 = vmatpush.xpose.msra.mxu0 0.0
    %1160 = vmatpush.xpose.msra.mxu0 0.0
    %1161 = vmatpush.xpose.msra.mxu0 0.0
    %1162 = vmatpush.xpose.msra.mxu0 0.0
    %1163 = vmatpush.xpose.msra.mxu0 0.0
    %1164 = vmatpush.xpose.msra.mxu0 0.0
    %1165 = vmatpush.xpose.msra.mxu0 0.0
    %1166 = vmatpush.xpose.msra.mxu0 0.0
    %1167 = vmatpush.xpose.msra.mxu0 0.0
    %1168 = vmatpush.xpose.msra.mxu0 0.0
    %1169 = vmatpush.xpose.msra.mxu0 0.0
    %1170 = vmatpush.xpose.msra.mxu0 0.0
    %1171 = vmatpush.xpose.msra.mxu0 0.0
    %1172 = vmatpush.xpose.msra.mxu0 0.0
    %v1173 = vand.u32 %v1021, 4294901760
    %1174 = vmatpush.xpose.msra.mxu0 %v1173
    %v1175 = vand.u32 %v1018, 4294901760
    %1176 = vmatpush.xpose.msra.mxu0 %v1175
    %v1177 = vand.u32 %v1015, 4294901760
    %1178 = vmatmul.f32.gmra.mxu0 %v1177
    %v1179 = vpop.f32.mrf.mxu0
    %v1180 = vadd.f32 %v1157, %v1179
    %1181 = vdwg.mxu0
    %v1183 = vsel %vm941, %v77, 0
    %v1186 = vsel %vm941, %v979, 0
    %v1189 = vsel %vm941, %v981, 0
    %1191 = vmatpush.xpose.msra.mxu0 0.0
    %1192 = vmatpush.xpose.msra.mxu0 0.0
    %1193 = vmatpush.xpose.msra.mxu0 0.0
    %1194 = vmatpush.xpose.msra.mxu0 0.0
    %1195 = vmatpush.xpose.msra.mxu0 0.0
    %1196 = vmatpush.xpose.msra.mxu0 0.0
    %1197 = vmatpush.xpose.msra.mxu0 0.0
    %1198 = vmatpush.xpose.msra.mxu0 0.0
    %1199 = vmatpush.xpose.msra.mxu0 0.0
    %1200 = vmatpush.xpose.msra.mxu0 0.0
    %1201 = vmatpush.xpose.msra.mxu0 0.0
    %1202 = vmatpush.xpose.msra.mxu0 0.0
    %1203 = vmatpush.xpose.msra.mxu0 0.0
    %1204 = vmatpush.xpose.msra.mxu0 0.0
    %v1205 = vand.u32 %v1189, 4294901760
    %1206 = vmatpush.xpose.msra.mxu0 %v1205
    %v1207 = vand.u32 %v1186, 4294901760
    %1208 = vmatpush.xpose.msra.mxu0 %v1207
    %v1209 = vand.u32 %v1183, 4294901760
    %v1210 = vsub.f32 %v1183, %v1209
    %v1211 = vand.u32 %v1210, 4294901760
    %v1212 = vsub.f32 %v1210, %v1211
    %v1213 = vand.u32 %v1212, 4294901760
    %1214 = vmatmul.f32.gmra.mxu0 %v1213
    %v1215 = vpop.f32.mrf.mxu0
    %v1216 = vadd.f32 0.0, %v1215
    %1217 = vdwg.mxu0
    %1218 = vmatpush.xpose.msra.mxu0 0.0
    %1219 = vmatpush.xpose.msra.mxu0 0.0
    %1220 = vmatpush.xpose.msra.mxu0 0.0
    %1221 = vmatpush.xpose.msra.mxu0 0.0
    %1222 = vmatpush.xpose.msra.mxu0 0.0
    %1223 = vmatpush.xpose.msra.mxu0 0.0
    %1224 = vmatpush.xpose.msra.mxu0 0.0
    %1225 = vmatpush.xpose.msra.mxu0 0.0
    %1226 = vmatpush.xpose.msra.mxu0 0.0
    %1227 = vmatpush.xpose.msra.mxu0 0.0
    %1228 = vmatpush.xpose.msra.mxu0 0.0
    %1229 = vmatpush.xpose.msra.mxu0 0.0
    %1230 = vmatpush.xpose.msra.mxu0 0.0
    %1231 = vmatpush.xpose.msra.mxu0 0.0
    %v1232 = vand.u32 %v1189, 4294901760
    %v1233 = vsub.f32 %v1189, %v1232
    %v1234 = vand.u32 %v1233, 4294901760
    %v1235 = vsub.f32 %v1233, %v1234
    %v1236 = vand.u32 %v1235, 4294901760
    %1237 = vmatpush.xpose.msra.mxu0 %v1236
    %v1238 = vand.u32 %v1186, 4294901760
    %v1239 = vsub.f32 %v1186, %v1238
    %v1240 = vand.u32 %v1239, 4294901760
    %v1241 = vsub.f32 %v1239, %v1240
    %v1242 = vand.u32 %v1241, 4294901760
    %1243 = vmatpush.xpose.msra.mxu0 %v1242
    %v1244 = vand.u32 %v1183, 4294901760
    %1245 = vmatmul.f32.gmra.mxu0 %v1244
    %v1246 = vpop.f32.mrf.mxu0
    %v1247 = vadd.f32 %v1216, %v1246
    %1248 = vdwg.mxu0
    %1249 = vmatpush.xpose.msra.mxu0 0.0
    %1250 = vmatpush.xpose.msra.mxu0 0.0
    %1251 = vmatpush.xpose.msra.mxu0 0.0
    %1252 = vmatpush.xpose.msra.mxu0 0.0
    %1253 = vmatpush.xpose.msra.mxu0 0.0
    %1254 = vmatpush.xpose.msra.mxu0 0.0
    %1255 = vmatpush.xpose.msra.mxu0 0.0
    %1256 = vmatpush.xpose.msra.mxu0 0.0
    %1257 = vmatpush.xpose.msra.mxu0 0.0
    %1258 = vmatpush.xpose.msra.mxu0 0.0
    %1259 = vmatpush.xpose.msra.mxu0 0.0
    %1260 = vmatpush.xpose.msra.mxu0 0.0
    %1261 = vmatpush.xpose.msra.mxu0 0.0
    %1262 = vmatpush.xpose.msra.mxu0 0.0
    %v1263 = vand.u32 %v1189, 4294901760
    %v1264 = vsub.f32 %v1189, %v1263
    %1265 = vmatpush.xpose.msra.mxu0 %v1264
    %v1266 = vand.u32 %v1186, 4294901760
    %v1267 = vsub.f32 %v1186, %v1266
    %1268 = vmatpush.xpose.msra.mxu0 %v1267
    %v1269 = vand.u32 %v1183, 4294901760
    %v1270 = vsub.f32 %v1183, %v1269
    %1271 = vmatmul.f32.gmra.mxu0 %v1270
    %v1272 = vpop.f32.mrf.mxu0
    %v1273 = vadd.f32 %v1247, %v1272
    %1274 = vdwg.mxu0
    %1275 = vmatpush.xpose.msra.mxu0 0.0
    %1276 = vmatpush.xpose.msra.mxu0 0.0
    %1277 = vmatpush.xpose.msra.mxu0 0.0
    %1278 = vmatpush.xpose.msra.mxu0 0.0
    %1279 = vmatpush.xpose.msra.mxu0 0.0
    %1280 = vmatpush.xpose.msra.mxu0 0.0
    %1281 = vmatpush.xpose.msra.mxu0 0.0
    %1282 = vmatpush.xpose.msra.mxu0 0.0
    %1283 = vmatpush.xpose.msra.mxu0 0.0
    %1284 = vmatpush.xpose.msra.mxu0 0.0
    %1285 = vmatpush.xpose.msra.mxu0 0.0
    %1286 = vmatpush.xpose.msra.mxu0 0.0
    %1287 = vmatpush.xpose.msra.mxu0 0.0
    %1288 = vmatpush.xpose.msra.mxu0 0.0
    %v1289 = vand.u32 %v1189, 4294901760
    %1290 = vmatpush.xpose.msra.mxu0 %v1289
    %v1291 = vand.u32 %v1186, 4294901760
    %1292 = vmatpush.xpose.msra.mxu0 %v1291
    %v1293 = vand.u32 %v1183, 4294901760
    %v1294 = vsub.f32 %v1183, %v1293
    %v1295 = vand.u32 %v1294, 4294901760
    %1296 = vmatmul.f32.gmra.mxu0 %v1295
    %v1297 = vpop.f32.mrf.mxu0
    %v1298 = vadd.f32 %v1273, %v1297
    %1299 = vdwg.mxu0
    %1300 = vmatpush.xpose.msra.mxu0 0.0
    %1301 = vmatpush.xpose.msra.mxu0 0.0
    %1302 = vmatpush.xpose.msra.mxu0 0.0
    %1303 = vmatpush.xpose.msra.mxu0 0.0
    %1304 = vmatpush.xpose.msra.mxu0 0.0
    %1305 = vmatpush.xpose.msra.mxu0 0.0
    %1306 = vmatpush.xpose.msra.mxu0 0.0
    %1307 = vmatpush.xpose.msra.mxu0 0.0
    %1308 = vmatpush.xpose.msra.mxu0 0.0
    %1309 = vmatpush.xpose.msra.mxu0 0.0
    %1310 = vmatpush.xpose.msra.mxu0 0.0
    %1311 = vmatpush.xpose.msra.mxu0 0.0
    %1312 = vmatpush.xpose.msra.mxu0 0.0
    %1313 = vmatpush.xpose.msra.mxu0 0.0
    %v1314 = vand.u32 %v1189, 4294901760
    %v1315 = vsub.f32 %v1189, %v1314
    %v1316 = vand.u32 %v1315, 4294901760
    %1317 = vmatpush.xpose.msra.mxu0 %v1316
    %v1318 = vand.u32 %v1186, 4294901760
    %v1319 = vsub.f32 %v1186, %v1318
    %v1320 = vand.u32 %v1319, 4294901760
    %1321 = vmatpush.xpose.msra.mxu0 %v1320
    %v1322 = vand.u32 %v1183, 4294901760
    %1323 = vmatmul.f32.gmra.mxu0 %v1322
    %v1324 = vpop.f32.mrf.mxu0
    %v1325 = vadd.f32 %v1298, %v1324
    %1326 = vdwg.mxu0
    %1327 = vmatpush.xpose.msra.mxu0 0.0
    %1328 = vmatpush.xpose.msra.mxu0 0.0
    %1329 = vmatpush.xpose.msra.mxu0 0.0
    %1330 = vmatpush.xpose.msra.mxu0 0.0
    %1331 = vmatpush.xpose.msra.mxu0 0.0
    %1332 = vmatpush.xpose.msra.mxu0 0.0
    %1333 = vmatpush.xpose.msra.mxu0 0.0
    %1334 = vmatpush.xpose.msra.mxu0 0.0
    %1335 = vmatpush.xpose.msra.mxu0 0.0
    %1336 = vmatpush.xpose.msra.mxu0 0.0
    %1337 = vmatpush.xpose.msra.mxu0 0.0
    %1338 = vmatpush.xpose.msra.mxu0 0.0
    %1339 = vmatpush.xpose.msra.mxu0 0.0
    %1340 = vmatpush.xpose.msra.mxu0 0.0
    %v1341 = vand.u32 %v1189, 4294901760
    %1342 = vmatpush.xpose.msra.mxu0 %v1341
    %v1343 = vand.u32 %v1186, 4294901760
    %1344 = vmatpush.xpose.msra.mxu0 %v1343
    %v1345 = vand.u32 %v1183, 4294901760
    %1346 = vmatmul.f32.gmra.mxu0 %v1345
    %v1347 = vpop.f32.mrf.mxu0
    %v1348 = vadd.f32 %v1325, %v1347
    %1349 = vdwg.mxu0
    %v1351 = vsel %vm941, %v78, 0
    %v1354 = vsel %vm941, %v983, 0
    %v1357 = vsel %vm941, %v985, 0
    %1359 = vmatpush.xpose.msra.mxu0 0.0
    %1360 = vmatpush.xpose.msra.mxu0 0.0
    %1361 = vmatpush.xpose.msra.mxu0 0.0
    %1362 = vmatpush.xpose.msra.mxu0 0.0
    %1363 = vmatpush.xpose.msra.mxu0 0.0
    %1364 = vmatpush.xpose.msra.mxu0 0.0
    %1365 = vmatpush.xpose.msra.mxu0 0.0
    %1366 = vmatpush.xpose.msra.mxu0 0.0
    %1367 = vmatpush.xpose.msra.mxu0 0.0
    %1368 = vmatpush.xpose.msra.mxu0 0.0
    %1369 = vmatpush.xpose.msra.mxu0 0.0
    %1370 = vmatpush.xpose.msra.mxu0 0.0
    %1371 = vmatpush.xpose.msra.mxu0 0.0
    %1372 = vmatpush.xpose.msra.mxu0 0.0
    %v1373 = vand.u32 %v1357, 4294901760
    %1374 = vmatpush.xpose.msra.mxu0 %v1373
    %v1375 = vand.u32 %v1354, 4294901760
    %1376 = vmatpush.xpose.msra.mxu0 %v1375
    %v1377 = vand.u32 %v1351, 4294901760
    %v1378 = vsub.f32 %v1351, %v1377
    %v1379 = vand.u32 %v1378, 4294901760
    %v1380 = vsub.f32 %v1378, %v1379
    %v1381 = vand.u32 %v1380, 4294901760
    %1382 = vmatmul.f32.gmra.mxu0 %v1381
    %v1383 = vpop.f32.mrf.mxu0
    %v1384 = vadd.f32 0.0, %v1383
    %1385 = vdwg.mxu0
    %1386 = vmatpush.xpose.msra.mxu0 0.0
    %1387 = vmatpush.xpose.msra.mxu0 0.0
    %1388 = vmatpush.xpose.msra.mxu0 0.0
    %1389 = vmatpush.xpose.msra.mxu0 0.0
    %1390 = vmatpush.xpose.msra.mxu0 0.0
    %1391 = vmatpush.xpose.msra.mxu0 0.0
    %1392 = vmatpush.xpose.msra.mxu0 0.0
    %1393 = vmatpush.xpose.msra.mxu0 0.0
    %1394 = vmatpush.xpose.msra.mxu0 0.0
    %1395 = vmatpush.xpose.msra.mxu0 0.0
    %1396 = vmatpush.xpose.msra.mxu0 0.0
    %1397 = vmatpush.xpose.msra.mxu0 0.0
    %1398 = vmatpush.xpose.msra.mxu0 0.0
    %1399 = vmatpush.xpose.msra.mxu0 0.0
    %v1400 = vand.u32 %v1357, 4294901760
    %v1401 = vsub.f32 %v1357, %v1400
    %v1402 = vand.u32 %v1401, 4294901760
    %v1403 = vsub.f32 %v1401, %v1402
    %v1404 = vand.u32 %v1403, 4294901760
    %1405 = vmatpush.xpose.msra.mxu0 %v1404
    %v1406 = vand.u32 %v1354, 4294901760
    %v1407 = vsub.f32 %v1354, %v1406
    %v1408 = vand.u32 %v1407, 4294901760
    %v1409 = vsub.f32 %v1407, %v1408
    %v1410 = vand.u32 %v1409, 4294901760
    %1411 = vmatpush.xpose.msra.mxu0 %v1410
    %v1412 = vand.u32 %v1351, 4294901760
    %1413 = vmatmul.f32.gmra.mxu0 %v1412
    %v1414 = vpop.f32.mrf.mxu0
    %v1415 = vadd.f32 %v1384, %v1414
    %1416 = vdwg.mxu0
    %1417 = vmatpush.xpose.msra.mxu0 0.0
    %1418 = vmatpush.xpose.msra.mxu0 0.0
    %1419 = vmatpush.xpose.msra.mxu0 0.0
    %1420 = vmatpush.xpose.msra.mxu0 0.0
    %1421 = vmatpush.xpose.msra.mxu0 0.0
    %1422 = vmatpush.xpose.msra.mxu0 0.0
    %1423 = vmatpush.xpose.msra.mxu0 0.0
    %1424 = vmatpush.xpose.msra.mxu0 0.0
    %1425 = vmatpush.xpose.msra.mxu0 0.0
    %1426 = vmatpush.xpose.msra.mxu0 0.0
    %1427 = vmatpush.xpose.msra.mxu0 0.0
    %1428 = vmatpush.xpose.msra.mxu0 0.0
    %1429 = vmatpush.xpose.msra.mxu0 0.0
    %1430 = vmatpush.xpose.msra.mxu0 0.0
    %v1431 = vand.u32 %v1357, 4294901760
    %v1432 = vsub.f32 %v1357, %v1431
    %1433 = vmatpush.xpose.msra.mxu0 %v1432
    %v1434 = vand.u32 %v1354, 4294901760
    %v1435 = vsub.f32 %v1354, %v1434
    %1436 = vmatpush.xpose.msra.mxu0 %v1435
    %v1437 = vand.u32 %v1351, 4294901760
    %v1438 = vsub.f32 %v1351, %v1437
    %1439 = vmatmul.f32.gmra.mxu0 %v1438
    %v1440 = vpop.f32.mrf.mxu0
    %v1441 = vadd.f32 %v1415, %v1440
    %1442 = vdwg.mxu0
    %1443 = vmatpush.xpose.msra.mxu0 0.0
    %1444 = vmatpush.xpose.msra.mxu0 0.0
    %1445 = vmatpush.xpose.msra.mxu0 0.0
    %1446 = vmatpush.xpose.msra.mxu0 0.0
    %1447 = vmatpush.xpose.msra.mxu0 0.0
    %1448 = vmatpush.xpose.msra.mxu0 0.0
    %1449 = vmatpush.xpose.msra.mxu0 0.0
    %1450 = vmatpush.xpose.msra.mxu0 0.0
    %1451 = vmatpush.xpose.msra.mxu0 0.0
    %1452 = vmatpush.xpose.msra.mxu0 0.0
    %1453 = vmatpush.xpose.msra.mxu0 0.0
    %1454 = vmatpush.xpose.msra.mxu0 0.0
    %1455 = vmatpush.xpose.msra.mxu0 0.0
    %1456 = vmatpush.xpose.msra.mxu0 0.0
    %v1457 = vand.u32 %v1357, 4294901760
    %1458 = vmatpush.xpose.msra.mxu0 %v1457
    %v1459 = vand.u32 %v1354, 4294901760
    %1460 = vmatpush.xpose.msra.mxu0 %v1459
    %v1461 = vand.u32 %v1351, 4294901760
    %v1462 = vsub.f32 %v1351, %v1461
    %v1463 = vand.u32 %v1462, 4294901760
    %1464 = vmatmul.f32.gmra.mxu0 %v1463
    %v1465 = vpop.f32.mrf.mxu0
    %v1466 = vadd.f32 %v1441, %v1465
    %1467 = vdwg.mxu0
    %1468 = vmatpush.xpose.msra.mxu0 0.0
    %1469 = vmatpush.xpose.msra.mxu0 0.0
    %1470 = vmatpush.xpose.msra.mxu0 0.0
    %1471 = vmatpush.xpose.msra.mxu0 0.0
    %1472 = vmatpush.xpose.msra.mxu0 0.0
    %1473 = vmatpush.xpose.msra.mxu0 0.0
    %1474 = vmatpush.xpose.msra.mxu0 0.0
    %1475 = vmatpush.xpose.msra.mxu0 0.0
    %1476 = vmatpush.xpose.msra.mxu0 0.0
    %1477 = vmatpush.xpose.msra.mxu0 0.0
    %1478 = vmatpush.xpose.msra.mxu0 0.0
    %1479 = vmatpush.xpose.msra.mxu0 0.0
    %1480 = vmatpush.xpose.msra.mxu0 0.0
    %1481 = vmatpush.xpose.msra.mxu0 0.0
    %v1482 = vand.u32 %v1357, 4294901760
    %v1483 = vsub.f32 %v1357, %v1482
    %v1484 = vand.u32 %v1483, 4294901760
    %1485 = vmatpush.xpose.msra.mxu0 %v1484
    %v1486 = vand.u32 %v1354, 4294901760
    %v1487 = vsub.f32 %v1354, %v1486
    %v1488 = vand.u32 %v1487, 4294901760
    %1489 = vmatpush.xpose.msra.mxu0 %v1488
    %v1490 = vand.u32 %v1351, 4294901760
    %1491 = vmatmul.f32.gmra.mxu0 %v1490
    %v1492 = vpop.f32.mrf.mxu0
    %v1493 = vadd.f32 %v1466, %v1492
    %1494 = vdwg.mxu0
    %1495 = vmatpush.xpose.msra.mxu0 0.0
    %1496 = vmatpush.xpose.msra.mxu0 0.0
    %1497 = vmatpush.xpose.msra.mxu0 0.0
    %1498 = vmatpush.xpose.msra.mxu0 0.0
    %1499 = vmatpush.xpose.msra.mxu0 0.0
    %1500 = vmatpush.xpose.msra.mxu0 0.0
    %1501 = vmatpush.xpose.msra.mxu0 0.0
    %1502 = vmatpush.xpose.msra.mxu0 0.0
    %1503 = vmatpush.xpose.msra.mxu0 0.0
    %1504 = vmatpush.xpose.msra.mxu0 0.0
    %1505 = vmatpush.xpose.msra.mxu0 0.0
    %1506 = vmatpush.xpose.msra.mxu0 0.0
    %1507 = vmatpush.xpose.msra.mxu0 0.0
    %1508 = vmatpush.xpose.msra.mxu0 0.0
    %v1509 = vand.u32 %v1357, 4294901760
    %1510 = vmatpush.xpose.msra.mxu0 %v1509
    %v1511 = vand.u32 %v1354, 4294901760
    %1512 = vmatpush.xpose.msra.mxu0 %v1511
    %v1513 = vand.u32 %v1351, 4294901760
    %1514 = vmatmul.f32.gmra.mxu0 %v1513
    %v1515 = vpop.f32.mrf.mxu0
    %v1516 = vadd.f32 %v1493, %v1515
    %1517 = vdwg.mxu0
    %v1519 = vsel %vm941, %v79, 0
    %v1522 = vsel %vm941, %v987, 0
    %v1525 = vsel %vm941, %v989, 0
    %1527 = vmatpush.xpose.msra.mxu0 0.0
    %1528 = vmatpush.xpose.msra.mxu0 0.0
    %1529 = vmatpush.xpose.msra.mxu0 0.0
    %1530 = vmatpush.xpose.msra.mxu0 0.0
    %1531 = vmatpush.xpose.msra.mxu0 0.0
    %1532 = vmatpush.xpose.msra.mxu0 0.0
    %1533 = vmatpush.xpose.msra.mxu0 0.0
    %1534 = vmatpush.xpose.msra.mxu0 0.0
    %1535 = vmatpush.xpose.msra.mxu0 0.0
    %1536 = vmatpush.xpose.msra.mxu0 0.0
    %1537 = vmatpush.xpose.msra.mxu0 0.0
    %1538 = vmatpush.xpose.msra.mxu0 0.0
    %1539 = vmatpush.xpose.msra.mxu0 0.0
    %1540 = vmatpush.xpose.msra.mxu0 0.0
    %v1541 = vand.u32 %v1525, 4294901760
    %1542 = vmatpush.xpose.msra.mxu0 %v1541
    %v1543 = vand.u32 %v1522, 4294901760
    %1544 = vmatpush.xpose.msra.mxu0 %v1543
    %v1545 = vand.u32 %v1519, 4294901760
    %v1546 = vsub.f32 %v1519, %v1545
    %v1547 = vand.u32 %v1546, 4294901760
    %v1548 = vsub.f32 %v1546, %v1547
    %v1549 = vand.u32 %v1548, 4294901760
    %1550 = vmatmul.f32.gmra.mxu0 %v1549
    %v1551 = vpop.f32.mrf.mxu0
    %v1552 = vadd.f32 0.0, %v1551
    %1553 = vdwg.mxu0
    %1554 = vmatpush.xpose.msra.mxu0 0.0
    %1555 = vmatpush.xpose.msra.mxu0 0.0
    %1556 = vmatpush.xpose.msra.mxu0 0.0
    %1557 = vmatpush.xpose.msra.mxu0 0.0
    %1558 = vmatpush.xpose.msra.mxu0 0.0
    %1559 = vmatpush.xpose.msra.mxu0 0.0
    %1560 = vmatpush.xpose.msra.mxu0 0.0
    %1561 = vmatpush.xpose.msra.mxu0 0.0
    %1562 = vmatpush.xpose.msra.mxu0 0.0
    %1563 = vmatpush.xpose.msra.mxu0 0.0
    %1564 = vmatpush.xpose.msra.mxu0 0.0
    %1565 = vmatpush.xpose.msra.mxu0 0.0
    %1566 = vmatpush.xpose.msra.mxu0 0.0
    %1567 = vmatpush.xpose.msra.mxu0 0.0
    %v1568 = vand.u32 %v1525, 4294901760
    %v1569 = vsub.f32 %v1525, %v1568
    %v1570 = vand.u32 %v1569, 4294901760
    %v1571 = vsub.f32 %v1569, %v1570
    %v1572 = vand.u32 %v1571, 4294901760
    %1573 = vmatpush.xpose.msra.mxu0 %v1572
    %v1574 = vand.u32 %v1522, 4294901760
    %v1575 = vsub.f32 %v1522, %v1574
    %v1576 = vand.u32 %v1575, 4294901760
    %v1577 = vsub.f32 %v1575, %v1576
    %v1578 = vand.u32 %v1577, 4294901760
    %1579 = vmatpush.xpose.msra.mxu0 %v1578
    %v1580 = vand.u32 %v1519, 4294901760
    %1581 = vmatmul.f32.gmra.mxu0 %v1580
    %v1582 = vpop.f32.mrf.mxu0
    %v1583 = vadd.f32 %v1552, %v1582
    %1584 = vdwg.mxu0
    %1585 = vmatpush.xpose.msra.mxu0 0.0
    %1586 = vmatpush.xpose.msra.mxu0 0.0
    %1587 = vmatpush.xpose.msra.mxu0 0.0
    %1588 = vmatpush.xpose.msra.mxu0 0.0
    %1589 = vmatpush.xpose.msra.mxu0 0.0
    %1590 = vmatpush.xpose.msra.mxu0 0.0
    %1591 = vmatpush.xpose.msra.mxu0 0.0
    %1592 = vmatpush.xpose.msra.mxu0 0.0
    %1593 = vmatpush.xpose.msra.mxu0 0.0
    %1594 = vmatpush.xpose.msra.mxu0 0.0
    %1595 = vmatpush.xpose.msra.mxu0 0.0
    %1596 = vmatpush.xpose.msra.mxu0 0.0
    %1597 = vmatpush.xpose.msra.mxu0 0.0
    %1598 = vmatpush.xpose.msra.mxu0 0.0
    %v1599 = vand.u32 %v1525, 4294901760
    %v1600 = vsub.f32 %v1525, %v1599
    %1601 = vmatpush.xpose.msra.mxu0 %v1600
    %v1602 = vand.u32 %v1522, 4294901760
    %v1603 = vsub.f32 %v1522, %v1602
    %1604 = vmatpush.xpose.msra.mxu0 %v1603
    %v1605 = vand.u32 %v1519, 4294901760
    %v1606 = vsub.f32 %v1519, %v1605
    %1607 = vmatmul.f32.gmra.mxu0 %v1606
    %v1608 = vpop.f32.mrf.mxu0
    %v1609 = vadd.f32 %v1583, %v1608
    %1610 = vdwg.mxu0
    %1611 = vmatpush.xpose.msra.mxu0 0.0
    %1612 = vmatpush.xpose.msra.mxu0 0.0
    %1613 = vmatpush.xpose.msra.mxu0 0.0
    %1614 = vmatpush.xpose.msra.mxu0 0.0
    %1615 = vmatpush.xpose.msra.mxu0 0.0
    %1616 = vmatpush.xpose.msra.mxu0 0.0
    %1617 = vmatpush.xpose.msra.mxu0 0.0
    %1618 = vmatpush.xpose.msra.mxu0 0.0
    %1619 = vmatpush.xpose.msra.mxu0 0.0
    %1620 = vmatpush.xpose.msra.mxu0 0.0
    %1621 = vmatpush.xpose.msra.mxu0 0.0
    %1622 = vmatpush.xpose.msra.mxu0 0.0
    %1623 = vmatpush.xpose.msra.mxu0 0.0
    %1624 = vmatpush.xpose.msra.mxu0 0.0
    %v1625 = vand.u32 %v1525, 4294901760
    %1626 = vmatpush.xpose.msra.mxu0 %v1625
    %v1627 = vand.u32 %v1522, 4294901760
    %1628 = vmatpush.xpose.msra.mxu0 %v1627
    %v1629 = vand.u32 %v1519, 4294901760
    %v1630 = vsub.f32 %v1519, %v1629
    %v1631 = vand.u32 %v1630, 4294901760
    %1632 = vmatmul.f32.gmra.mxu0 %v1631
    %v1633 = vpop.f32.mrf.mxu0
    %v1634 = vadd.f32 %v1609, %v1633
    %1635 = vdwg.mxu0
    %1636 = vmatpush.xpose.msra.mxu0 0.0
    %1637 = vmatpush.xpose.msra.mxu0 0.0
    %1638 = vmatpush.xpose.msra.mxu0 0.0
    %1639 = vmatpush.xpose.msra.mxu0 0.0
    %1640 = vmatpush.xpose.msra.mxu0 0.0
    %1641 = vmatpush.xpose.msra.mxu0 0.0
    %1642 = vmatpush.xpose.msra.mxu0 0.0
    %1643 = vmatpush.xpose.msra.mxu0 0.0
    %1644 = vmatpush.xpose.msra.mxu0 0.0
    %1645 = vmatpush.xpose.msra.mxu0 0.0
    %1646 = vmatpush.xpose.msra.mxu0 0.0
    %1647 = vmatpush.xpose.msra.mxu0 0.0
    %1648 = vmatpush.xpose.msra.mxu0 0.0
    %1649 = vmatpush.xpose.msra.mxu0 0.0
    %v1650 = vand.u32 %v1525, 4294901760
    %v1651 = vsub.f32 %v1525, %v1650
    %v1652 = vand.u32 %v1651, 4294901760
    %1653 = vmatpush.xpose.msra.mxu0 %v1652
    %v1654 = vand.u32 %v1522, 4294901760
    %v1655 = vsub.f32 %v1522, %v1654
    %v1656 = vand.u32 %v1655, 4294901760
    %1657 = vmatpush.xpose.msra.mxu0 %v1656
    %v1658 = vand.u32 %v1519, 4294901760
    %1659 = vmatmul.f32.gmra.mxu0 %v1658
    %v1660 = vpop.f32.mrf.mxu0
    %v1661 = vadd.f32 %v1634, %v1660
    %1662 = vdwg.mxu0
    %1663 = vmatpush.xpose.msra.mxu0 0.0
    %1664 = vmatpush.xpose.msra.mxu0 0.0
    %1665 = vmatpush.xpose.msra.mxu0 0.0
    %1666 = vmatpush.xpose.msra.mxu0 0.0
    %1667 = vmatpush.xpose.msra.mxu0 0.0
    %1668 = vmatpush.xpose.msra.mxu0 0.0
    %1669 = vmatpush.xpose.msra.mxu0 0.0
    %1670 = vmatpush.xpose.msra.mxu0 0.0
    %1671 = vmatpush.xpose.msra.mxu0 0.0
    %1672 = vmatpush.xpose.msra.mxu0 0.0
    %1673 = vmatpush.xpose.msra.mxu0 0.0
    %1674 = vmatpush.xpose.msra.mxu0 0.0
    %1675 = vmatpush.xpose.msra.mxu0 0.0
    %1676 = vmatpush.xpose.msra.mxu0 0.0
    %v1677 = vand.u32 %v1525, 4294901760
    %1678 = vmatpush.xpose.msra.mxu0 %v1677
    %v1679 = vand.u32 %v1522, 4294901760
    %1680 = vmatpush.xpose.msra.mxu0 %v1679
    %v1681 = vand.u32 %v1519, 4294901760
    %1682 = vmatmul.f32.gmra.mxu0 %v1681
    %v1683 = vpop.f32.mrf.mxu0
    %v1684 = vadd.f32 %v1661, %v1683
    %1685 = vdwg.mxu0
    %v1686 = vrcp.pop %v992
    %v1687 = vrcp.pop %v995
    %v1688 = vrcp.pop %v998
    %v1689 = vrcp.pop %v1001
    %v1690 = vrcp.pop %v1004
    %v1691 = vrcp.pop %v1007
    %v1692 = vrcp.pop %v1010
    %v1693 = vrcp.pop %v1013
    %v1694 = vmul.f32 %v992, %v1686
    %v1695 = vmul.f32 %v995, %v1687
    %v1696 = vmul.f32 %v998, %v1688
    %v1697 = vmul.f32 %v1001, %v1689
    %v1698 = vmul.f32 %v1004, %v1690
    %v1699 = vmul.f32 %v1007, %v1691
    %v1700 = vmul.f32 %v1010, %v1692
    %v1701 = vmul.f32 %v1013, %v1693
    %v1702 = vsub.f32 2.0, %v1694
    %v1703 = vsub.f32 2.0, %v1695
    %v1704 = vsub.f32 2.0, %v1696
    %v1705 = vsub.f32 2.0, %v1697
    %v1706 = vsub.f32 2.0, %v1698
    %v1707 = vsub.f32 2.0, %v1699
    %v1708 = vsub.f32 2.0, %v1700
    %v1709 = vsub.f32 2.0, %v1701
    %v1710 = vmul.f32 %v1686, %v1702
    %v1711 = vmul.f32 %v1687, %v1703
    %v1712 = vmul.f32 %v1688, %v1704
    %v1713 = vmul.f32 %v1689, %v1705
    %v1714 = vmul.f32 %v1690, %v1706
    %v1715 = vmul.f32 %v1691, %v1707
    %v1716 = vmul.f32 %v1692, %v1708
    %v1717 = vmul.f32 %v1693, %v1709
    %v1726 = vlaneseq
    %v1727 = vand.u32 %v1726, 127
    %v1728 = vperm.slane %v1710, %v1727
    %v1729 = vadd.s32 %v1727, 4294967288
    %v1730 = vperm.slane %v1711, %v1729
    %vm1731 = vcmask 130112
    %v1732 = vsel %vm1731, %v1730, %v1728
    %v1733 = vperm.slane %v1712, %v1727
    %v1734 = vperm.slane %v1713, %v1729
    %v1735 = vsel %vm1731, %v1734, %v1733
    %v1736 = vperm.slane %v1714, %v1727
    %v1737 = vperm.slane %v1715, %v1729
    %v1738 = vsel %vm1731, %v1737, %v1736
    %v1739 = vperm.slane %v1716, %v1727
    %v1740 = vperm.slane %v1717, %v1729
    %v1741 = vsel %vm1731, %v1740, %v1739
    %vm1742 = vcmask 1042434
    %v1743 = vsel %vm1742, %v1732, %v1732
    %vm1744 = vcmask 1043459
    %v1745 = vsel %vm1744, %v1732, %v1743
    %vm1746 = vcmask 1044484
    %v1747 = vsel %vm1746, %v1732, %v1745
    %vm1748 = vcmask 1045509
    %v1749 = vsel %vm1748, %v1732, %v1747
    %vm1750 = vcmask 1046534
    %v1751 = vsel %vm1750, %v1732, %v1749
    %vm1752 = vcmask 1047559
    %v1753 = vsel %vm1752, %v1732, %v1751
    %v1754 = vsel %vm1742, %v1735, %v1735
    %v1755 = vsel %vm1744, %v1735, %v1754
    %v1756 = vsel %vm1746, %v1735, %v1755
    %v1757 = vsel %vm1748, %v1735, %v1756
    %v1758 = vsel %vm1750, %v1735, %v1757
    %v1759 = vsel %vm1752, %v1735, %v1758
    %v1760 = vsel %vm1742, %v1738, %v1738
    %v1761 = vsel %vm1744, %v1738, %v1760
    %v1762 = vsel %vm1746, %v1738, %v1761
    %v1763 = vsel %vm1748, %v1738, %v1762
    %v1764 = vsel %vm1750, %v1738, %v1763
    %v1765 = vsel %vm1752, %v1738, %v1764
    %v1766 = vsel %vm1742, %v1741, %v1741
    %v1767 = vsel %vm1744, %v1741, %v1766
    %v1768 = vsel %vm1746, %v1741, %v1767
    %v1769 = vsel %vm1748, %v1741, %v1768
    %v1770 = vsel %vm1750, %v1741, %v1769
    %v1771 = vsel %vm1752, %v1741, %v1770
    %v1776 = vmul.f32 %v1180, %v1753
    %v1777 = vmul.f32 %v1348, %v1759
    %v1778 = vmul.f32 %v1516, %v1765
    %v1779 = vmul.f32 %v1684, %v1771
    %1780 = vst.msk [vmem:[#allocation8] sm:$0xff] %vm941, %v1776
    %1781 = vst.msk [vmem:[#allocation8 + $0x8] sm:$0xff] %vm941, %v1777
    %1782 = vst.msk [vmem:[#allocation8 + $0x10] sm:$0xff] %vm941, %v1778
    %1783 = vst.msk [vmem:[#allocation8 + $0x18] sm:$0xff] %vm941, %v1779
    // Predicated region
    $region26: #{tpu_custom_call.1} parent=1 // pred_check
      _
    $region27: #{tpu_custom_call.1} parent=1 // pred_check_branch
      %1785 = sbr.rel (0) target = $region29
    $region28: #{tpu_custom_call.1} parent=1 // pred_region
      %1787 = vsyncadd [#allocation4], 0
      %s1788 = sshll.u32 [#allocation8], 4
      %s1789 = int_to_ptr.vmem [resolvable:$true] %s1788
      %s1790 = sshll.u32 %s3, 4
      %s1791 = int_to_ptr.hbm [resolvable:$true] %s1790
      %1796 = dma.vmem_to_hbm [thread:$0]  %s1789, 512, %s1791, [#allocation4], 128, 128, 8
    $region29: #{tpu_custom_call.1} parent=1 // pred_fallthru
      _
    // Predicated region
    $region30: #{tpu_custom_call.1} parent=1 // pred_check
      _
    $region31: #{tpu_custom_call.1} parent=1 // pred_check_branch
      %1798 = sbr.rel (0) target = $region33
    $region32: #{tpu_custom_call.1} parent=1 // pred_region
      %1800 = dma.done [#allocation4], 512
    $region33: #{tpu_custom_call.1} parent=1 // pred_fallthru
      _
    %1801 = vsyncpa [#allocation3], 1
    %1802 = vsyncpa [#allocation6], 1
    %1803 = vsyncpa [#allocation4], 1

</llo_original>
